<compile_context>
chip_gen: v5e
topology: v5e:2x2
jax: 0.10.0
libtpu: 0.0.40
codegen_flags: <defaults>
</compile_context>

<pallas_src>
import functools
import math

import jax
import jax.numpy as jnp
from jax.experimental import pallas as pl
from jax.experimental.pallas import tpu as pltpu

# Small synthetic configuration (module defaults are E=512, L=6, H=8).
EMBED = 64
NHEAD = 4
NLAYERS = 2
FFN = 4 * EMBED
HEAD_DIM = EMBED // NHEAD
OUT_DIM = 13 * 13
LN_EPS = 1e-5

PARAM_ORDER = (
    "wqkv", "bqkv", "wo", "bo", "ln1g", "ln1b",
    "w1", "b1", "w2", "b2", "ln2g", "ln2b",
    "wa", "ba", "wb", "bb",
)


def _layer_norm(x, g, b):
    mu = jnp.mean(x, axis=-1, keepdims=True)
    var = jnp.mean((x - mu) ** 2, axis=-1, keepdims=True)
    return (x - mu) * jax.lax.rsqrt(var + LN_EPS) * g + b


def decoder_kernel(x_ref,
                   wqkv_ref, bqkv_ref, wo_ref, bo_ref, ln1g_ref, ln1b_ref,
                   w1_ref, b1_ref, w2_ref, b2_ref, ln2g_ref, ln2b_ref,
                   wa_ref, ba_ref, wb_ref, bb_ref,
                   out_ref, *, batch, seq):
    # x_ref is the whole token slab (B*S, E); all weights are fully resident.
    x = x_ref[...].astype(jnp.float32)
    scale = 1.0 / math.sqrt(HEAD_DIM)

    for l in range(NLAYERS):  # static unroll over layers
        # ---- fused QKV projection: one (B*S, E) x (E, 3E) bf16 MXU matmul ----
        qkv = jnp.dot(x.astype(jnp.bfloat16), wqkv_ref[l],
                      preferred_element_type=jnp.float32) + bqkv_ref[l]

        # ---- batched-head self attention ----
        # Build (B*NHEAD, S, HEAD_DIM) stacks with static slices, then run the
        # score / softmax / PV steps as two batched 3-D contractions.
        def head_block(base, b, h):
            lo = base + h * HEAD_DIM
            return qkv[b * seq:(b + 1) * seq, lo:lo + HEAD_DIM]

        qh = jnp.stack([head_block(0, b, h)
                        for b in range(batch) for h in range(NHEAD)], axis=0)
        kh = jnp.stack([head_block(EMBED, b, h)
                        for b in range(batch) for h in range(NHEAD)], axis=0)
        vh = jnp.stack([head_block(2 * EMBED, b, h)
                        for b in range(batch) for h in range(NHEAD)], axis=0)

        s = jnp.einsum("hqd,hkd->hqk", qh, kh,
                       preferred_element_type=jnp.float32) * scale
        m = jnp.max(s, axis=-1, keepdims=True)
        p = jnp.exp(s - m)
        p = p * pl.reciprocal(jnp.sum(p, axis=-1, keepdims=True), approx=True)
        o = jnp.einsum("hqk,hkd->hqd", p, vh,
                       preferred_element_type=jnp.float32)   # (B*H, S, HD)

        attn = jnp.concatenate(
            [jnp.concatenate([o[b * NHEAD + h] for h in range(NHEAD)], axis=-1)
             for b in range(batch)], axis=0)                  # (B*S, E)

        attn = jnp.dot(attn.astype(jnp.bfloat16), wo_ref[l],
                       preferred_element_type=jnp.float32) + bo_ref[l]
        x = _layer_norm(x + attn, ln1g_ref[l], ln1b_ref[l])

        # ---- feed forward: Linear -> ReLU -> Linear ----
        h1 = jnp.dot(x.astype(jnp.bfloat16), w1_ref[l],
                     preferred_element_type=jnp.float32) + b1_ref[l]
        h1 = jnp.maximum(h1, 0.0)
        ff = jnp.dot(h1.astype(jnp.bfloat16), w2_ref[l],
                     preferred_element_type=jnp.float32) + b2_ref[l]
        x = _layer_norm(x + ff, ln2g_ref[l], ln2b_ref[l])

    # ---- to_map head: Linear(E,E) -> ReLU -> Linear(E, 169) ----
    hmap = jnp.dot(x.astype(jnp.bfloat16), wa_ref[...],
                   preferred_element_type=jnp.float32) + ba_ref[...]
    hmap = jnp.maximum(hmap, 0.0)
    y = jnp.dot(hmap.astype(jnp.bfloat16), wb_ref[...],
                preferred_element_type=jnp.float32) + bb_ref[...]
    out_ref[...] = y.astype(out_ref.dtype)


def transformer_decoder(x, params):
    B, S, E = x.shape
    assert E == EMBED
    weights = [params[k] for k in PARAM_ORDER]
    kernel = functools.partial(decoder_kernel, batch=B, seq=S)
    # Grid-free call: whole problem fits in VMEM at this size, so every array
    # is mapped fully into VMEM and the kernel runs once (no per-batch steps).
    y = pl.pallas_call(
        kernel,
        out_shape=jax.ShapeDtypeStruct((B * S, OUT_DIM), jnp.float32),
        compiler_params=pltpu.CompilerParams(vmem_limit_bytes=32 * 1024 * 1024),
    )(x.reshape(B * S, E), *weights)
    return y.reshape(B, S, 1, 13, 13)


def init_params(key):
    keys = iter(jax.random.split(key, 12))

    def w(shape, scale=0.05):
        # Matmul weights stored pre-transposed (in, out) and in bf16.
        return (scale * jax.random.normal(next(keys), shape, jnp.float32)
                ).astype(jnp.bfloat16)

    def b(shape, scale=0.02):
        return scale * jax.random.normal(next(keys), shape, jnp.float32)

    return {
        "wqkv": w((NLAYERS, EMBED, 3 * EMBED)),
        "bqkv": b((NLAYERS, 1, 3 * EMBED)),
        "wo":   w((NLAYERS, EMBED, EMBED)),
        "bo":   b((NLAYERS, 1, EMBED)),
        "ln1g": jnp.ones((NLAYERS, 1, EMBED), jnp.float32),
        "ln1b": jnp.zeros((NLAYERS, 1, EMBED), jnp.float32),
        "w1":   w((NLAYERS, EMBED, FFN)),
        "b1":   b((NLAYERS, 1, FFN)),
        "w2":   w((NLAYERS, FFN, EMBED)),
        "b2":   b((NLAYERS, 1, EMBED)),
        "ln2g": jnp.ones((NLAYERS, 1, EMBED), jnp.float32),
        "ln2b": jnp.zeros((NLAYERS, 1, EMBED), jnp.float32),
        "wa":   w((EMBED, EMBED)),
        "ba":   b((1, EMBED)),
        "wb":   w((EMBED, OUT_DIM)),
        "bb":   b((1, OUT_DIM)),
    }


def reference(x, p):
    """Pure-JAX (f32) reference with identical eval-mode semantics."""
    B, S, E = x.shape

    def ln(v, g, b):
        mu = v.mean(-1, keepdims=True)
        var = ((v - mu) ** 2).mean(-1, keepdims=True)
        return (v - mu) / jnp.sqrt(var + LN_EPS) * g + b

    h = x
    for l in range(NLAYERS):
        qkv = h @ p["wqkv"][l].astype(jnp.float32) + p["bqkv"][l]
        q, k, v = jnp.split(qkv, 3, axis=-1)
        q = q.reshape(B, S, NHEAD, HEAD_DIM)
        k = k.reshape(B, S, NHEAD, HEAD_DIM)
        v = v.reshape(B, S, NHEAD, HEAD_DIM)
        s = jnp.einsum("bqhd,bkhd->bhqk", q, k) / math.sqrt(HEAD_DIM)
        a = jax.nn.softmax(s, axis=-1)
        o = jnp.einsum("bhqk,bkhd->bqhd", a, v).reshape(B, S, E)
        o = o @ p["wo"][l].astype(jnp.float32) + p["bo"][l]
        h = ln(h + o, p["ln1g"][l], p["ln1b"][l])
        f = jax.nn.relu(h @ p["w1"][l].astype(jnp.float32) + p["b1"][l])
        f = f @ p["w2"][l].astype(jnp.float32) + p["b2"][l]
        h = ln(h + f, p["ln2g"][l], p["ln2b"][l])
    m = jax.nn.relu(h @ p["wa"].astype(jnp.float32) + p["ba"])
    y = m @ p["wb"].astype(jnp.float32) + p["bb"]
    return y.reshape(B, S, 1, 13, 13)


if __name__ == "__main__":
    key = jax.random.PRNGKey(0)
    kx, kp = jax.random.split(key)
    B, S = 2, 8
    x = jax.random.normal(kx, (B, S, EMBED), jnp.float32)
    params = init_params(kp)

    out = jax.block_until_ready(transformer_decoder(x, params))
    assert out.shape == (B, S, 1, 13, 13), out.shape

    ref = reference(x, params)
    max_err = float(jnp.max(jnp.abs(out - ref)))
    # bf16 matmul operands + approx reciprocal -> bf16-level tolerance.
    assert jnp.allclose(out, ref, rtol=2e-2, atol=2e-2), max_err
    print("KERNEL_OK")
</pallas_src>

<mosaic_0001>
module attributes {stable_mosaic.version = 11 : i64} {
  func.func @decoder_kernel(%arg0: memref<16x64xf32, #tpu.memory_space<vmem>>, %arg1: memref<2x64x192xbf16, #tpu.memory_space<vmem>>, %arg2: memref<2x1x192xf32, #tpu.memory_space<vmem>>, %arg3: memref<2x64x64xbf16, #tpu.memory_space<vmem>>, %arg4: memref<2x1x64xf32, #tpu.memory_space<vmem>>, %arg5: memref<2x1x64xf32, #tpu.memory_space<vmem>>, %arg6: memref<2x1x64xf32, #tpu.memory_space<vmem>>, %arg7: memref<2x64x256xbf16, #tpu.memory_space<vmem>>, %arg8: memref<2x1x256xf32, #tpu.memory_space<vmem>>, %arg9: memref<2x256x64xbf16, #tpu.memory_space<vmem>>, %arg10: memref<2x1x64xf32, #tpu.memory_space<vmem>>, %arg11: memref<2x1x64xf32, #tpu.memory_space<vmem>>, %arg12: memref<2x1x64xf32, #tpu.memory_space<vmem>>, %arg13: memref<64x64xbf16, #tpu.memory_space<vmem>>, %arg14: memref<1x64xf32, #tpu.memory_space<vmem>>, %arg15: memref<64x169xbf16, #tpu.memory_space<vmem>>, %arg16: memref<1x169xf32, #tpu.memory_space<vmem>>, %arg17: memref<16x169xf32, #tpu.memory_space<vmem>>) attributes {dimension_semantics = [], scalar_prefetch = 0 : i64, scratch_operands = 0 : i64, tpu.core_type = #tpu.core_type<tc>} {
    %c0 = arith.constant 0 : index
    %c0_0 = arith.constant 0 : index
    %0 = vector.load %arg0[%c0, %c0_0] : memref<16x64xf32, #tpu.memory_space<vmem>>, vector<16x64xf32>
    %1 = arith.truncf %0 : vector<16x64xf32> to vector<16x64xbf16>
    %c0_1 = arith.constant 0 : index
    %c0_2 = arith.constant 0 : index
    %c0_3 = arith.constant 0 : index
    %2 = vector.load %arg1[%c0_1, %c0_2, %c0_3] : memref<2x64x192xbf16, #tpu.memory_space<vmem>>, vector<1x64x192xbf16>
    %3 = vector.shape_cast %2 : vector<1x64x192xbf16> to vector<64x192xbf16>
    %cst = arith.constant dense<0.000000e+00> : vector<16x192xf32>
    %4 = tpu.matmul %1, %3, %cst {dimension_numbers = #tpu.dot_dimension_numbers<[1], [0], [0], [1], [0, 0, 1, 1], [], []>} : vector<16x64xbf16>, vector<64x192xbf16>, vector<16x192xf32> -> vector<16x192xf32>
    %c0_4 = arith.constant 0 : index
    %c0_5 = arith.constant 0 : index
    %c0_6 = arith.constant 0 : index
    %5 = vector.load %arg2[%c0_4, %c0_5, %c0_6] : memref<2x1x192xf32, #tpu.memory_space<vmem>>, vector<1x1x192xf32>
    %6 = vector.shape_cast %5 : vector<1x1x192xf32> to vector<1x192xf32>
    %7 = vector.broadcast %6 : vector<1x192xf32> to vector<16x192xf32>
    %8 = arith.addf %4, %7 : vector<16x192xf32>
    %9 = vector.extract_strided_slice %8 {offsets = [0, 0], sizes = [8, 16], strides = [1, 1]} : vector<16x192xf32> to vector<8x16xf32>
    %10 = vector.extract_strided_slice %8 {offsets = [0, 16], sizes = [8, 16], strides = [1, 1]} : vector<16x192xf32> to vector<8x16xf32>
    %11 = vector.extract_strided_slice %8 {offsets = [0, 32], sizes = [8, 16], strides = [1, 1]} : vector<16x192xf32> to vector<8x16xf32>
    %12 = vector.extract_strided_slice %8 {offsets = [0, 48], sizes = [8, 16], strides = [1, 1]} : vector<16x192xf32> to vector<8x16xf32>
    %13 = vector.extract_strided_slice %8 {offsets = [8, 0], sizes = [8, 16], strides = [1, 1]} : vector<16x192xf32> to vector<8x16xf32>
    %14 = vector.extract_strided_slice %8 {offsets = [8, 16], sizes = [8, 16], strides = [1, 1]} : vector<16x192xf32> to vector<8x16xf32>
    %15 = vector.extract_strided_slice %8 {offsets = [8, 32], sizes = [8, 16], strides = [1, 1]} : vector<16x192xf32> to vector<8x16xf32>
    %16 = vector.extract_strided_slice %8 {offsets = [8, 48], sizes = [8, 16], strides = [1, 1]} : vector<16x192xf32> to vector<8x16xf32>
    %17 = vector.shape_cast %9 : vector<8x16xf32> to vector<1x8x16xf32>
    %18 = vector.shape_cast %10 : vector<8x16xf32> to vector<1x8x16xf32>
    %19 = vector.shape_cast %11 : vector<8x16xf32> to vector<1x8x16xf32>
    %20 = vector.shape_cast %12 : vector<8x16xf32> to vector<1x8x16xf32>
    %21 = vector.shape_cast %13 : vector<8x16xf32> to vector<1x8x16xf32>
    %22 = vector.shape_cast %14 : vector<8x16xf32> to vector<1x8x16xf32>
    %23 = vector.shape_cast %15 : vector<8x16xf32> to vector<1x8x16xf32>
    %24 = vector.shape_cast %16 : vector<8x16xf32> to vector<1x8x16xf32>
    %25 = tpu.concatenate %17, %18, %19, %20, %21, %22, %23, %24 in 0 : vector<1x8x16xf32>, vector<1x8x16xf32>, vector<1x8x16xf32>, vector<1x8x16xf32>, vector<1x8x16xf32>, vector<1x8x16xf32>, vector<1x8x16xf32>, vector<1x8x16xf32> -> vector<8x8x16xf32>
    %26 = vector.extract_strided_slice %8 {offsets = [0, 64], sizes = [8, 16], strides = [1, 1]} : vector<16x192xf32> to vector<8x16xf32>
    %27 = vector.extract_strided_slice %8 {offsets = [0, 80], sizes = [8, 16], strides = [1, 1]} : vector<16x192xf32> to vector<8x16xf32>
    %28 = vector.extract_strided_slice %8 {offsets = [0, 96], sizes = [8, 16], strides = [1, 1]} : vector<16x192xf32> to vector<8x16xf32>
    %29 = vector.extract_strided_slice %8 {offsets = [0, 112], sizes = [8, 16], strides = [1, 1]} : vector<16x192xf32> to vector<8x16xf32>
    %30 = vector.extract_strided_slice %8 {offsets = [8, 64], sizes = [8, 16], strides = [1, 1]} : vector<16x192xf32> to vector<8x16xf32>
    %31 = vector.extract_strided_slice %8 {offsets = [8, 80], sizes = [8, 16], strides = [1, 1]} : vector<16x192xf32> to vector<8x16xf32>
    %32 = vector.extract_strided_slice %8 {offsets = [8, 96], sizes = [8, 16], strides = [1, 1]} : vector<16x192xf32> to vector<8x16xf32>
    %33 = vector.extract_strided_slice %8 {offsets = [8, 112], sizes = [8, 16], strides = [1, 1]} : vector<16x192xf32> to vector<8x16xf32>
    %34 = vector.shape_cast %26 : vector<8x16xf32> to vector<1x8x16xf32>
    %35 = vector.shape_cast %27 : vector<8x16xf32> to vector<1x8x16xf32>
    %36 = vector.shape_cast %28 : vector<8x16xf32> to vector<1x8x16xf32>
    %37 = vector.shape_cast %29 : vector<8x16xf32> to vector<1x8x16xf32>
    %38 = vector.shape_cast %30 : vector<8x16xf32> to vector<1x8x16xf32>
    %39 = vector.shape_cast %31 : vector<8x16xf32> to vector<1x8x16xf32>
    %40 = vector.shape_cast %32 : vector<8x16xf32> to vector<1x8x16xf32>
    %41 = vector.shape_cast %33 : vector<8x16xf32> to vector<1x8x16xf32>
    %42 = tpu.concatenate %34, %35, %36, %37, %38, %39, %40, %41 in 0 : vector<1x8x16xf32>, vector<1x8x16xf32>, vector<1x8x16xf32>, vector<1x8x16xf32>, vector<1x8x16xf32>, vector<1x8x16xf32>, vector<1x8x16xf32>, vector<1x8x16xf32> -> vector<8x8x16xf32>
    %43 = vector.extract_strided_slice %8 {offsets = [0, 128], sizes = [8, 16], strides = [1, 1]} : vector<16x192xf32> to vector<8x16xf32>
    %44 = vector.extract_strided_slice %8 {offsets = [0, 144], sizes = [8, 16], strides = [1, 1]} : vector<16x192xf32> to vector<8x16xf32>
    %45 = vector.extract_strided_slice %8 {offsets = [0, 160], sizes = [8, 16], strides = [1, 1]} : vector<16x192xf32> to vector<8x16xf32>
    %46 = vector.extract_strided_slice %8 {offsets = [0, 176], sizes = [8, 16], strides = [1, 1]} : vector<16x192xf32> to vector<8x16xf32>
    %47 = vector.extract_strided_slice %8 {offsets = [8, 128], sizes = [8, 16], strides = [1, 1]} : vector<16x192xf32> to vector<8x16xf32>
    %48 = vector.extract_strided_slice %8 {offsets = [8, 144], sizes = [8, 16], strides = [1, 1]} : vector<16x192xf32> to vector<8x16xf32>
    %49 = vector.extract_strided_slice %8 {offsets = [8, 160], sizes = [8, 16], strides = [1, 1]} : vector<16x192xf32> to vector<8x16xf32>
    %50 = vector.extract_strided_slice %8 {offsets = [8, 176], sizes = [8, 16], strides = [1, 1]} : vector<16x192xf32> to vector<8x16xf32>
    %51 = vector.shape_cast %43 : vector<8x16xf32> to vector<1x8x16xf32>
    %52 = vector.shape_cast %44 : vector<8x16xf32> to vector<1x8x16xf32>
    %53 = vector.shape_cast %45 : vector<8x16xf32> to vector<1x8x16xf32>
    %54 = vector.shape_cast %46 : vector<8x16xf32> to vector<1x8x16xf32>
    %55 = vector.shape_cast %47 : vector<8x16xf32> to vector<1x8x16xf32>
    %56 = vector.shape_cast %48 : vector<8x16xf32> to vector<1x8x16xf32>
    %57 = vector.shape_cast %49 : vector<8x16xf32> to vector<1x8x16xf32>
    %58 = vector.shape_cast %50 : vector<8x16xf32> to vector<1x8x16xf32>
    %59 = tpu.concatenate %51, %52, %53, %54, %55, %56, %57, %58 in 0 : vector<1x8x16xf32>, vector<1x8x16xf32>, vector<1x8x16xf32>, vector<1x8x16xf32>, vector<1x8x16xf32>, vector<1x8x16xf32>, vector<1x8x16xf32>, vector<1x8x16xf32> -> vector<8x8x16xf32>
    "tpu.trace_start"() <{level = 10 : i32, message = "hqd,hkd->hqk"}> : () -> ()
    %cst_7 = arith.constant dense<0.000000e+00> : vector<8x8x8xf32>
    %60 = tpu.matmul %25, %42, %cst_7 {dimension_numbers = #tpu.dot_dimension_numbers<[2], [2], [1], [1], [0, 0, 0, 1, 1, 1], [0], [0]>} : vector<8x8x16xf32>, vector<8x8x16xf32>, vector<8x8x8xf32> -> vector<8x8x8xf32>
    "tpu.trace_stop"() : () -> ()
    %cst_8 = arith.constant 2.500000e-01 : f32
    %61 = vector.broadcast %cst_8 : f32 to vector<8x8x8xf32>
    %62 = arith.mulf %60, %61 : vector<8x8x8xf32>
    %cst_9 = arith.constant dense<0xFF800000> : vector<8x8xf32>
    %63 = vector.multi_reduction <maximumf>, %62, %cst_9 [2] : vector<8x8x8xf32> to vector<8x8xf32>
    %64 = vector.shape_cast %63 : vector<8x8xf32> to vector<8x8x1xf32>
    %65 = vector.broadcast %64 : vector<8x8x1xf32> to vector<8x8x8xf32>
    %66 = arith.subf %62, %65 : vector<8x8x8xf32>
    %67 = math.exp %66 : vector<8x8x8xf32>
    %cst_10 = arith.constant dense<0.000000e+00> : vector<8x8xf32>
    %68 = vector.multi_reduction <add>, %67, %cst_10 [2] : vector<8x8x8xf32> to vector<8x8xf32>
    %69 = vector.shape_cast %68 : vector<8x8xf32> to vector<8x8x1xf32>
    %70 = tpu.reciprocal %69 {approx = true} : vector<8x8x1xf32> -> vector<8x8x1xf32>
    %71 = vector.broadcast %70 : vector<8x8x1xf32> to vector<8x8x8xf32>
    %72 = arith.mulf %67, %71 : vector<8x8x8xf32>
    "tpu.trace_start"() <{level = 10 : i32, message = "hqk,hkd->hqd"}> : () -> ()
    %cst_11 = arith.constant dense<0.000000e+00> : vector<8x8x16xf32>
    %73 = tpu.matmul %72, %59, %cst_11 {dimension_numbers = #tpu.dot_dimension_numbers<[2], [1], [1], [2], [0, 0, 0, 1, 1, 2], [0], [0]>} : vector<8x8x8xf32>, vector<8x8x16xf32>, vector<8x8x16xf32> -> vector<8x8x16xf32>
    "tpu.trace_stop"() : () -> ()
    %74 = vector.extract_strided_slice %73 {offsets = [0, 0, 0], sizes = [1, 8, 16], strides = [1, 1, 1]} : vector<8x8x16xf32> to vector<1x8x16xf32>
    %75 = vector.shape_cast %74 : vector<1x8x16xf32> to vector<8x16xf32>
    %76 = vector.extract_strided_slice %73 {offsets = [1, 0, 0], sizes = [1, 8, 16], strides = [1, 1, 1]} : vector<8x8x16xf32> to vector<1x8x16xf32>
    %77 = vector.shape_cast %76 : vector<1x8x16xf32> to vector<8x16xf32>
    %78 = vector.extract_strided_slice %73 {offsets = [2, 0, 0], sizes = [1, 8, 16], strides = [1, 1, 1]} : vector<8x8x16xf32> to vector<1x8x16xf32>
    %79 = vector.shape_cast %78 : vector<1x8x16xf32> to vector<8x16xf32>
    %80 = vector.extract_strided_slice %73 {offsets = [3, 0, 0], sizes = [1, 8, 16], strides = [1, 1, 1]} : vector<8x8x16xf32> to vector<1x8x16xf32>
    %81 = vector.shape_cast %80 : vector<1x8x16xf32> to vector<8x16xf32>
    %82 = tpu.concatenate %75, %77, %79, %81 in 1 : vector<8x16xf32>, vector<8x16xf32>, vector<8x16xf32>, vector<8x16xf32> -> vector<8x64xf32>
    %83 = vector.extract_strided_slice %73 {offsets = [4, 0, 0], sizes = [1, 8, 16], strides = [1, 1, 1]} : vector<8x8x16xf32> to vector<1x8x16xf32>
    %84 = vector.shape_cast %83 : vector<1x8x16xf32> to vector<8x16xf32>
    %85 = vector.extract_strided_slice %73 {offsets = [5, 0, 0], sizes = [1, 8, 16], strides = [1, 1, 1]} : vector<8x8x16xf32> to vector<1x8x16xf32>
    %86 = vector.shape_cast %85 : vector<1x8x16xf32> to vector<8x16xf32>
    %87 = vector.extract_strided_slice %73 {offsets = [6, 0, 0], sizes = [1, 8, 16], strides = [1, 1, 1]} : vector<8x8x16xf32> to vector<1x8x16xf32>
    %88 = vector.shape_cast %87 : vector<1x8x16xf32> to vector<8x16xf32>
    %89 = vector.extract_strided_slice %73 {offsets = [7, 0, 0], sizes = [1, 8, 16], strides = [1, 1, 1]} : vector<8x8x16xf32> to vector<1x8x16xf32>
    %90 = vector.shape_cast %89 : vector<1x8x16xf32> to vector<8x16xf32>
    %91 = tpu.concatenate %84, %86, %88, %90 in 1 : vector<8x16xf32>, vector<8x16xf32>, vector<8x16xf32>, vector<8x16xf32> -> vector<8x64xf32>
    %92 = tpu.concatenate %82, %91 in 0 : vector<8x64xf32>, vector<8x64xf32> -> vector<16x64xf32>
    %93 = arith.truncf %92 : vector<16x64xf32> to vector<16x64xbf16>
    %c0_12 = arith.constant 0 : index
    %c0_13 = arith.constant 0 : index
    %c0_14 = arith.constant 0 : index
    %94 = vector.load %arg3[%c0_12, %c0_13, %c0_14] : memref<2x64x64xbf16, #tpu.memory_space<vmem>>, vector<1x64x64xbf16>
    %95 = vector.shape_cast %94 : vector<1x64x64xbf16> to vector<64x64xbf16>
    %cst_15 = arith.constant dense<0.000000e+00> : vector<16x64xf32>
    %96 = tpu.matmul %93, %95, %cst_15 {dimension_numbers = #tpu.dot_dimension_numbers<[1], [0], [0], [1], [0, 0, 1, 1], [], []>} : vector<16x64xbf16>, vector<64x64xbf16>, vector<16x64xf32> -> vector<16x64xf32>
    %c0_16 = arith.constant 0 : index
    %c0_17 = arith.constant 0 : index
    %c0_18 = arith.constant 0 : index
    %97 = vector.load %arg4[%c0_16, %c0_17, %c0_18] : memref<2x1x64xf32, #tpu.memory_space<vmem>>, vector<1x1x64xf32>
    %98 = vector.shape_cast %97 : vector<1x1x64xf32> to vector<1x64xf32>
    %99 = vector.broadcast %98 : vector<1x64xf32> to vector<16x64xf32>
    %100 = arith.addf %96, %99 : vector<16x64xf32>
    %101 = arith.addf %0, %100 : vector<16x64xf32>
    %c0_19 = arith.constant 0 : index
    %c0_20 = arith.constant 0 : index
    %c0_21 = arith.constant 0 : index
    %102 = vector.load %arg5[%c0_19, %c0_20, %c0_21] : memref<2x1x64xf32, #tpu.memory_space<vmem>>, vector<1x1x64xf32>
    %103 = vector.shape_cast %102 : vector<1x1x64xf32> to vector<1x64xf32>
    %c0_22 = arith.constant 0 : index
    %c0_23 = arith.constant 0 : index
    %c0_24 = arith.constant 0 : index
    %104 = vector.load %arg6[%c0_22, %c0_23, %c0_24] : memref<2x1x64xf32, #tpu.memory_space<vmem>>, vector<1x1x64xf32>
    %105 = vector.shape_cast %104 : vector<1x1x64xf32> to vector<1x64xf32>
    %cst_25 = arith.constant dense<0.000000e+00> : vector<16xf32>
    %106 = vector.multi_reduction <add>, %101, %cst_25 [1] : vector<16x64xf32> to vector<16xf32>
    %107 = vector.shape_cast %106 : vector<16xf32> to vector<16x1xf32>
    %cst_26 = arith.constant 6.400000e+01 : f32
    %108 = vector.broadcast %cst_26 : f32 to vector<16x1xf32>
    %109 = arith.divf %107, %108 : vector<16x1xf32>
    %110 = vector.broadcast %109 : vector<16x1xf32> to vector<16x64xf32>
    %111 = arith.subf %101, %110 : vector<16x64xf32>
    %112 = arith.mulf %111, %111 : vector<16x64xf32>
    %cst_27 = arith.constant dense<0.000000e+00> : vector<16xf32>
    %113 = vector.multi_reduction <add>, %112, %cst_27 [1] : vector<16x64xf32> to vector<16xf32>
    %114 = vector.shape_cast %113 : vector<16xf32> to vector<16x1xf32>
    %cst_28 = arith.constant 6.400000e+01 : f32
    %115 = vector.broadcast %cst_28 : f32 to vector<16x1xf32>
    %116 = arith.divf %114, %115 : vector<16x1xf32>
    %117 = vector.broadcast %109 : vector<16x1xf32> to vector<16x64xf32>
    %118 = arith.subf %101, %117 : vector<16x64xf32>
    %cst_29 = arith.constant 9.99999974E-6 : f32
    %119 = vector.broadcast %cst_29 : f32 to vector<16x1xf32>
    %120 = arith.addf %116, %119 : vector<16x1xf32>
    %121 = math.rsqrt %120 : vector<16x1xf32>
    %122 = vector.broadcast %121 : vector<16x1xf32> to vector<16x64xf32>
    %123 = arith.mulf %118, %122 : vector<16x64xf32>
    %124 = vector.broadcast %103 : vector<1x64xf32> to vector<16x64xf32>
    %125 = arith.mulf %123, %124 : vector<16x64xf32>
    %126 = vector.broadcast %105 : vector<1x64xf32> to vector<16x64xf32>
    %127 = arith.addf %125, %126 : vector<16x64xf32>
    %128 = arith.truncf %127 : vector<16x64xf32> to vector<16x64xbf16>
    %c0_30 = arith.constant 0 : index
    %c0_31 = arith.constant 0 : index
    %c0_32 = arith.constant 0 : index
    %129 = vector.load %arg7[%c0_30, %c0_31, %c0_32] : memref<2x64x256xbf16, #tpu.memory_space<vmem>>, vector<1x64x256xbf16>
    %130 = vector.shape_cast %129 : vector<1x64x256xbf16> to vector<64x256xbf16>
    %cst_33 = arith.constant dense<0.000000e+00> : vector<16x256xf32>
    %131 = tpu.matmul %128, %130, %cst_33 {dimension_numbers = #tpu.dot_dimension_numbers<[1], [0], [0], [1], [0, 0, 1, 1], [], []>} : vector<16x64xbf16>, vector<64x256xbf16>, vector<16x256xf32> -> vector<16x256xf32>
    %c0_34 = arith.constant 0 : index
    %c0_35 = arith.constant 0 : index
    %c0_36 = arith.constant 0 : index
    %132 = vector.load %arg8[%c0_34, %c0_35, %c0_36] : memref<2x1x256xf32, #tpu.memory_space<vmem>>, vector<1x1x256xf32>
    %133 = vector.shape_cast %132 : vector<1x1x256xf32> to vector<1x256xf32>
    %134 = vector.broadcast %133 : vector<1x256xf32> to vector<16x256xf32>
    %135 = arith.addf %131, %134 : vector<16x256xf32>
    %cst_37 = arith.constant 0.000000e+00 : f32
    %136 = vector.broadcast %cst_37 : f32 to vector<16x256xf32>
    %137 = arith.maximumf %135, %136 : vector<16x256xf32>
    %138 = arith.truncf %137 : vector<16x256xf32> to vector<16x256xbf16>
    %c0_38 = arith.constant 0 : index
    %c0_39 = arith.constant 0 : index
    %c0_40 = arith.constant 0 : index
    %139 = vector.load %arg9[%c0_38, %c0_39, %c0_40] : memref<2x256x64xbf16, #tpu.memory_space<vmem>>, vector<1x256x64xbf16>
    %140 = vector.shape_cast %139 : vector<1x256x64xbf16> to vector<256x64xbf16>
    %cst_41 = arith.constant dense<0.000000e+00> : vector<16x64xf32>
    %141 = tpu.matmul %138, %140, %cst_41 {dimension_numbers = #tpu.dot_dimension_numbers<[1], [0], [0], [1], [0, 0, 1, 1], [], []>} : vector<16x256xbf16>, vector<256x64xbf16>, vector<16x64xf32> -> vector<16x64xf32>
    %c0_42 = arith.constant 0 : index
    %c0_43 = arith.constant 0 : index
    %c0_44 = arith.constant 0 : index
    %142 = vector.load %arg10[%c0_42, %c0_43, %c0_44] : memref<2x1x64xf32, #tpu.memory_space<vmem>>, vector<1x1x64xf32>
    %143 = vector.shape_cast %142 : vector<1x1x64xf32> to vector<1x64xf32>
    %144 = vector.broadcast %143 : vector<1x64xf32> to vector<16x64xf32>
    %145 = arith.addf %141, %144 : vector<16x64xf32>
    %146 = arith.addf %127, %145 : vector<16x64xf32>
    %c0_45 = arith.constant 0 : index
    %c0_46 = arith.constant 0 : index
    %c0_47 = arith.constant 0 : index
    %147 = vector.load %arg11[%c0_45, %c0_46, %c0_47] : memref<2x1x64xf32, #tpu.memory_space<vmem>>, vector<1x1x64xf32>
    %148 = vector.shape_cast %147 : vector<1x1x64xf32> to vector<1x64xf32>
    %c0_48 = arith.constant 0 : index
    %c0_49 = arith.constant 0 : index
    %c0_50 = arith.constant 0 : index
    %149 = vector.load %arg12[%c0_48, %c0_49, %c0_50] : memref<2x1x64xf32, #tpu.memory_space<vmem>>, vector<1x1x64xf32>
    %150 = vector.shape_cast %149 : vector<1x1x64xf32> to vector<1x64xf32>
    %cst_51 = arith.constant dense<0.000000e+00> : vector<16xf32>
    %151 = vector.multi_reduction <add>, %146, %cst_51 [1] : vector<16x64xf32> to vector<16xf32>
    %152 = vector.shape_cast %151 : vector<16xf32> to vector<16x1xf32>
    %cst_52 = arith.constant 6.400000e+01 : f32
    %153 = vector.broadcast %cst_52 : f32 to vector<16x1xf32>
    %154 = arith.divf %152, %153 : vector<16x1xf32>
    %155 = vector.broadcast %154 : vector<16x1xf32> to vector<16x64xf32>
    %156 = arith.subf %146, %155 : vector<16x64xf32>
    %157 = arith.mulf %156, %156 : vector<16x64xf32>
    %cst_53 = arith.constant dense<0.000000e+00> : vector<16xf32>
    %158 = vector.multi_reduction <add>, %157, %cst_53 [1] : vector<16x64xf32> to vector<16xf32>
    %159 = vector.shape_cast %158 : vector<16xf32> to vector<16x1xf32>
    %cst_54 = arith.constant 6.400000e+01 : f32
    %160 = vector.broadcast %cst_54 : f32 to vector<16x1xf32>
    %161 = arith.divf %159, %160 : vector<16x1xf32>
    %162 = vector.broadcast %154 : vector<16x1xf32> to vector<16x64xf32>
    %163 = arith.subf %146, %162 : vector<16x64xf32>
    %cst_55 = arith.constant 9.99999974E-6 : f32
    %164 = vector.broadcast %cst_55 : f32 to vector<16x1xf32>
    %165 = arith.addf %161, %164 : vector<16x1xf32>
    %166 = math.rsqrt %165 : vector<16x1xf32>
    %167 = vector.broadcast %166 : vector<16x1xf32> to vector<16x64xf32>
    %168 = arith.mulf %163, %167 : vector<16x64xf32>
    %169 = vector.broadcast %148 : vector<1x64xf32> to vector<16x64xf32>
    %170 = arith.mulf %168, %169 : vector<16x64xf32>
    %171 = vector.broadcast %150 : vector<1x64xf32> to vector<16x64xf32>
    %172 = arith.addf %170, %171 : vector<16x64xf32>
    %173 = arith.truncf %172 : vector<16x64xf32> to vector<16x64xbf16>
    %c1 = arith.constant 1 : index
    %c0_56 = arith.constant 0 : index
    %c0_57 = arith.constant 0 : index
    %174 = vector.load %arg1[%c1, %c0_56, %c0_57] : memref<2x64x192xbf16, #tpu.memory_space<vmem>>, vector<1x64x192xbf16>
    %175 = vector.shape_cast %174 : vector<1x64x192xbf16> to vector<64x192xbf16>
    %cst_58 = arith.constant dense<0.000000e+00> : vector<16x192xf32>
    %176 = tpu.matmul %173, %175, %cst_58 {dimension_numbers = #tpu.dot_dimension_numbers<[1], [0], [0], [1], [0, 0, 1, 1], [], []>} : vector<16x64xbf16>, vector<64x192xbf16>, vector<16x192xf32> -> vector<16x192xf32>
    %c1_59 = arith.constant 1 : index
    %c0_60 = arith.constant 0 : index
    %c0_61 = arith.constant 0 : index
    %177 = vector.load %arg2[%c1_59, %c0_60, %c0_61] : memref<2x1x192xf32, #tpu.memory_space<vmem>>, vector<1x1x192xf32>
    %178 = vector.shape_cast %177 : vector<1x1x192xf32> to vector<1x192xf32>
    %179 = vector.broadcast %178 : vector<1x192xf32> to vector<16x192xf32>
    %180 = arith.addf %176, %179 : vector<16x192xf32>
    %181 = vector.extract_strided_slice %180 {offsets = [0, 0], sizes = [8, 16], strides = [1, 1]} : vector<16x192xf32> to vector<8x16xf32>
    %182 = vector.extract_strided_slice %180 {offsets = [0, 16], sizes = [8, 16], strides = [1, 1]} : vector<16x192xf32> to vector<8x16xf32>
    %183 = vector.extract_strided_slice %180 {offsets = [0, 32], sizes = [8, 16], strides = [1, 1]} : vector<16x192xf32> to vector<8x16xf32>
    %184 = vector.extract_strided_slice %180 {offsets = [0, 48], sizes = [8, 16], strides = [1, 1]} : vector<16x192xf32> to vector<8x16xf32>
    %185 = vector.extract_strided_slice %180 {offsets = [8, 0], sizes = [8, 16], strides = [1, 1]} : vector<16x192xf32> to vector<8x16xf32>
    %186 = vector.extract_strided_slice %180 {offsets = [8, 16], sizes = [8, 16], strides = [1, 1]} : vector<16x192xf32> to vector<8x16xf32>
    %187 = vector.extract_strided_slice %180 {offsets = [8, 32], sizes = [8, 16], strides = [1, 1]} : vector<16x192xf32> to vector<8x16xf32>
    %188 = vector.extract_strided_slice %180 {offsets = [8, 48], sizes = [8, 16], strides = [1, 1]} : vector<16x192xf32> to vector<8x16xf32>
    %189 = vector.shape_cast %181 : vector<8x16xf32> to vector<1x8x16xf32>
    %190 = vector.shape_cast %182 : vector<8x16xf32> to vector<1x8x16xf32>
    %191 = vector.shape_cast %183 : vector<8x16xf32> to vector<1x8x16xf32>
    %192 = vector.shape_cast %184 : vector<8x16xf32> to vector<1x8x16xf32>
    %193 = vector.shape_cast %185 : vector<8x16xf32> to vector<1x8x16xf32>
    %194 = vector.shape_cast %186 : vector<8x16xf32> to vector<1x8x16xf32>
    %195 = vector.shape_cast %187 : vector<8x16xf32> to vector<1x8x16xf32>
    %196 = vector.shape_cast %188 : vector<8x16xf32> to vector<1x8x16xf32>
    %197 = tpu.concatenate %189, %190, %191, %192, %193, %194, %195, %196 in 0 : vector<1x8x16xf32>, vector<1x8x16xf32>, vector<1x8x16xf32>, vector<1x8x16xf32>, vector<1x8x16xf32>, vector<1x8x16xf32>, vector<1x8x16xf32>, vector<1x8x16xf32> -> vector<8x8x16xf32>
    %198 = vector.extract_strided_slice %180 {offsets = [0, 64], sizes = [8, 16], strides = [1, 1]} : vector<16x192xf32> to vector<8x16xf32>
    %199 = vector.extract_strided_slice %180 {offsets = [0, 80], sizes = [8, 16], strides = [1, 1]} : vector<16x192xf32> to vector<8x16xf32>
    %200 = vector.extract_strided_slice %180 {offsets = [0, 96], sizes = [8, 16], strides = [1, 1]} : vector<16x192xf32> to vector<8x16xf32>
    %201 = vector.extract_strided_slice %180 {offsets = [0, 112], sizes = [8, 16], strides = [1, 1]} : vector<16x192xf32> to vector<8x16xf32>
    %202 = vector.extract_strided_slice %180 {offsets = [8, 64], sizes = [8, 16], strides = [1, 1]} : vector<16x192xf32> to vector<8x16xf32>
    %203 = vector.extract_strided_slice %180 {offsets = [8, 80], sizes = [8, 16], strides = [1, 1]} : vector<16x192xf32> to vector<8x16xf32>
    %204 = vector.extract_strided_slice %180 {offsets = [8, 96], sizes = [8, 16], strides = [1, 1]} : vector<16x192xf32> to vector<8x16xf32>
    %205 = vector.extract_strided_slice %180 {offsets = [8, 112], sizes = [8, 16], strides = [1, 1]} : vector<16x192xf32> to vector<8x16xf32>
    %206 = vector.shape_cast %198 : vector<8x16xf32> to vector<1x8x16xf32>
    %207 = vector.shape_cast %199 : vector<8x16xf32> to vector<1x8x16xf32>
    %208 = vector.shape_cast %200 : vector<8x16xf32> to vector<1x8x16xf32>
    %209 = vector.shape_cast %201 : vector<8x16xf32> to vector<1x8x16xf32>
    %210 = vector.shape_cast %202 : vector<8x16xf32> to vector<1x8x16xf32>
    %211 = vector.shape_cast %203 : vector<8x16xf32> to vector<1x8x16xf32>
    %212 = vector.shape_cast %204 : vector<8x16xf32> to vector<1x8x16xf32>
    %213 = vector.shape_cast %205 : vector<8x16xf32> to vector<1x8x16xf32>
    %214 = tpu.concatenate %206, %207, %208, %209, %210, %211, %212, %213 in 0 : vector<1x8x16xf32>, vector<1x8x16xf32>, vector<1x8x16xf32>, vector<1x8x16xf32>, vector<1x8x16xf32>, vector<1x8x16xf32>, vector<1x8x16xf32>, vector<1x8x16xf32> -> vector<8x8x16xf32>
    %215 = vector.extract_strided_slice %180 {offsets = [0, 128], sizes = [8, 16], strides = [1, 1]} : vector<16x192xf32> to vector<8x16xf32>
    %216 = vector.extract_strided_slice %180 {offsets = [0, 144], sizes = [8, 16], strides = [1, 1]} : vector<16x192xf32> to vector<8x16xf32>
    %217 = vector.extract_strided_slice %180 {offsets = [0, 160], sizes = [8, 16], strides = [1, 1]} : vector<16x192xf32> to vector<8x16xf32>
    %218 = vector.extract_strided_slice %180 {offsets = [0, 176], sizes = [8, 16], strides = [1, 1]} : vector<16x192xf32> to vector<8x16xf32>
    %219 = vector.extract_strided_slice %180 {offsets = [8, 128], sizes = [8, 16], strides = [1, 1]} : vector<16x192xf32> to vector<8x16xf32>
    %220 = vector.extract_strided_slice %180 {offsets = [8, 144], sizes = [8, 16], strides = [1, 1]} : vector<16x192xf32> to vector<8x16xf32>
    %221 = vector.extract_strided_slice %180 {offsets = [8, 160], sizes = [8, 16], strides = [1, 1]} : vector<16x192xf32> to vector<8x16xf32>
    %222 = vector.extract_strided_slice %180 {offsets = [8, 176], sizes = [8, 16], strides = [1, 1]} : vector<16x192xf32> to vector<8x16xf32>
    %223 = vector.shape_cast %215 : vector<8x16xf32> to vector<1x8x16xf32>
    %224 = vector.shape_cast %216 : vector<8x16xf32> to vector<1x8x16xf32>
    %225 = vector.shape_cast %217 : vector<8x16xf32> to vector<1x8x16xf32>
    %226 = vector.shape_cast %218 : vector<8x16xf32> to vector<1x8x16xf32>
    %227 = vector.shape_cast %219 : vector<8x16xf32> to vector<1x8x16xf32>
    %228 = vector.shape_cast %220 : vector<8x16xf32> to vector<1x8x16xf32>
    %229 = vector.shape_cast %221 : vector<8x16xf32> to vector<1x8x16xf32>
    %230 = vector.shape_cast %222 : vector<8x16xf32> to vector<1x8x16xf32>
    %231 = tpu.concatenate %223, %224, %225, %226, %227, %228, %229, %230 in 0 : vector<1x8x16xf32>, vector<1x8x16xf32>, vector<1x8x16xf32>, vector<1x8x16xf32>, vector<1x8x16xf32>, vector<1x8x16xf32>, vector<1x8x16xf32>, vector<1x8x16xf32> -> vector<8x8x16xf32>
    "tpu.trace_start"() <{level = 10 : i32, message = "hqd,hkd->hqk"}> : () -> ()
    %cst_62 = arith.constant dense<0.000000e+00> : vector<8x8x8xf32>
    %232 = tpu.matmul %197, %214, %cst_62 {dimension_numbers = #tpu.dot_dimension_numbers<[2], [2], [1], [1], [0, 0, 0, 1, 1, 1], [0], [0]>} : vector<8x8x16xf32>, vector<8x8x16xf32>, vector<8x8x8xf32> -> vector<8x8x8xf32>
    "tpu.trace_stop"() : () -> ()
    %cst_63 = arith.constant 2.500000e-01 : f32
    %233 = vector.broadcast %cst_63 : f32 to vector<8x8x8xf32>
    %234 = arith.mulf %232, %233 : vector<8x8x8xf32>
    %cst_64 = arith.constant dense<0xFF800000> : vector<8x8xf32>
    %235 = vector.multi_reduction <maximumf>, %234, %cst_64 [2] : vector<8x8x8xf32> to vector<8x8xf32>
    %236 = vector.shape_cast %235 : vector<8x8xf32> to vector<8x8x1xf32>
    %237 = vector.broadcast %236 : vector<8x8x1xf32> to vector<8x8x8xf32>
    %238 = arith.subf %234, %237 : vector<8x8x8xf32>
    %239 = math.exp %238 : vector<8x8x8xf32>
    %cst_65 = arith.constant dense<0.000000e+00> : vector<8x8xf32>
    %240 = vector.multi_reduction <add>, %239, %cst_65 [2] : vector<8x8x8xf32> to vector<8x8xf32>
    %241 = vector.shape_cast %240 : vector<8x8xf32> to vector<8x8x1xf32>
    %242 = tpu.reciprocal %241 {approx = true} : vector<8x8x1xf32> -> vector<8x8x1xf32>
    %243 = vector.broadcast %242 : vector<8x8x1xf32> to vector<8x8x8xf32>
    %244 = arith.mulf %239, %243 : vector<8x8x8xf32>
    "tpu.trace_start"() <{level = 10 : i32, message = "hqk,hkd->hqd"}> : () -> ()
    %cst_66 = arith.constant dense<0.000000e+00> : vector<8x8x16xf32>
    %245 = tpu.matmul %244, %231, %cst_66 {dimension_numbers = #tpu.dot_dimension_numbers<[2], [1], [1], [2], [0, 0, 0, 1, 1, 2], [0], [0]>} : vector<8x8x8xf32>, vector<8x8x16xf32>, vector<8x8x16xf32> -> vector<8x8x16xf32>
    "tpu.trace_stop"() : () -> ()
    %246 = vector.extract_strided_slice %245 {offsets = [0, 0, 0], sizes = [1, 8, 16], strides = [1, 1, 1]} : vector<8x8x16xf32> to vector<1x8x16xf32>
    %247 = vector.shape_cast %246 : vector<1x8x16xf32> to vector<8x16xf32>
    %248 = vector.extract_strided_slice %245 {offsets = [1, 0, 0], sizes = [1, 8, 16], strides = [1, 1, 1]} : vector<8x8x16xf32> to vector<1x8x16xf32>
    %249 = vector.shape_cast %248 : vector<1x8x16xf32> to vector<8x16xf32>
    %250 = vector.extract_strided_slice %245 {offsets = [2, 0, 0], sizes = [1, 8, 16], strides = [1, 1, 1]} : vector<8x8x16xf32> to vector<1x8x16xf32>
    %251 = vector.shape_cast %250 : vector<1x8x16xf32> to vector<8x16xf32>
    %252 = vector.extract_strided_slice %245 {offsets = [3, 0, 0], sizes = [1, 8, 16], strides = [1, 1, 1]} : vector<8x8x16xf32> to vector<1x8x16xf32>
    %253 = vector.shape_cast %252 : vector<1x8x16xf32> to vector<8x16xf32>
    %254 = tpu.concatenate %247, %249, %251, %253 in 1 : vector<8x16xf32>, vector<8x16xf32>, vector<8x16xf32>, vector<8x16xf32> -> vector<8x64xf32>
    %255 = vector.extract_strided_slice %245 {offsets = [4, 0, 0], sizes = [1, 8, 16], strides = [1, 1, 1]} : vector<8x8x16xf32> to vector<1x8x16xf32>
    %256 = vector.shape_cast %255 : vector<1x8x16xf32> to vector<8x16xf32>
    %257 = vector.extract_strided_slice %245 {offsets = [5, 0, 0], sizes = [1, 8, 16], strides = [1, 1, 1]} : vector<8x8x16xf32> to vector<1x8x16xf32>
    %258 = vector.shape_cast %257 : vector<1x8x16xf32> to vector<8x16xf32>
    %259 = vector.extract_strided_slice %245 {offsets = [6, 0, 0], sizes = [1, 8, 16], strides = [1, 1, 1]} : vector<8x8x16xf32> to vector<1x8x16xf32>
    %260 = vector.shape_cast %259 : vector<1x8x16xf32> to vector<8x16xf32>
    %261 = vector.extract_strided_slice %245 {offsets = [7, 0, 0], sizes = [1, 8, 16], strides = [1, 1, 1]} : vector<8x8x16xf32> to vector<1x8x16xf32>
    %262 = vector.shape_cast %261 : vector<1x8x16xf32> to vector<8x16xf32>
    %263 = tpu.concatenate %256, %258, %260, %262 in 1 : vector<8x16xf32>, vector<8x16xf32>, vector<8x16xf32>, vector<8x16xf32> -> vector<8x64xf32>
    %264 = tpu.concatenate %254, %263 in 0 : vector<8x64xf32>, vector<8x64xf32> -> vector<16x64xf32>
    %265 = arith.truncf %264 : vector<16x64xf32> to vector<16x64xbf16>
    %c1_67 = arith.constant 1 : index
    %c0_68 = arith.constant 0 : index
    %c0_69 = arith.constant 0 : index
    %266 = vector.load %arg3[%c1_67, %c0_68, %c0_69] : memref<2x64x64xbf16, #tpu.memory_space<vmem>>, vector<1x64x64xbf16>
    %267 = vector.shape_cast %266 : vector<1x64x64xbf16> to vector<64x64xbf16>
    %cst_70 = arith.constant dense<0.000000e+00> : vector<16x64xf32>
    %268 = tpu.matmul %265, %267, %cst_70 {dimension_numbers = #tpu.dot_dimension_numbers<[1], [0], [0], [1], [0, 0, 1, 1], [], []>} : vector<16x64xbf16>, vector<64x64xbf16>, vector<16x64xf32> -> vector<16x64xf32>
    %c1_71 = arith.constant 1 : index
    %c0_72 = arith.constant 0 : index
    %c0_73 = arith.constant 0 : index
    %269 = vector.load %arg4[%c1_71, %c0_72, %c0_73] : memref<2x1x64xf32, #tpu.memory_space<vmem>>, vector<1x1x64xf32>
    %270 = vector.shape_cast %269 : vector<1x1x64xf32> to vector<1x64xf32>
    %271 = vector.broadcast %270 : vector<1x64xf32> to vector<16x64xf32>
    %272 = arith.addf %268, %271 : vector<16x64xf32>
    %273 = arith.addf %172, %272 : vector<16x64xf32>
    %c1_74 = arith.constant 1 : index
    %c0_75 = arith.constant 0 : index
    %c0_76 = arith.constant 0 : index
    %274 = vector.load %arg5[%c1_74, %c0_75, %c0_76] : memref<2x1x64xf32, #tpu.memory_space<vmem>>, vector<1x1x64xf32>
    %275 = vector.shape_cast %274 : vector<1x1x64xf32> to vector<1x64xf32>
    %c1_77 = arith.constant 1 : index
    %c0_78 = arith.constant 0 : index
    %c0_79 = arith.constant 0 : index
    %276 = vector.load %arg6[%c1_77, %c0_78, %c0_79] : memref<2x1x64xf32, #tpu.memory_space<vmem>>, vector<1x1x64xf32>
    %277 = vector.shape_cast %276 : vector<1x1x64xf32> to vector<1x64xf32>
    %cst_80 = arith.constant dense<0.000000e+00> : vector<16xf32>
    %278 = vector.multi_reduction <add>, %273, %cst_80 [1] : vector<16x64xf32> to vector<16xf32>
    %279 = vector.shape_cast %278 : vector<16xf32> to vector<16x1xf32>
    %cst_81 = arith.constant 6.400000e+01 : f32
    %280 = vector.broadcast %cst_81 : f32 to vector<16x1xf32>
    %281 = arith.divf %279, %280 : vector<16x1xf32>
    %282 = vector.broadcast %281 : vector<16x1xf32> to vector<16x64xf32>
    %283 = arith.subf %273, %282 : vector<16x64xf32>
    %284 = arith.mulf %283, %283 : vector<16x64xf32>
    %cst_82 = arith.constant dense<0.000000e+00> : vector<16xf32>
    %285 = vector.multi_reduction <add>, %284, %cst_82 [1] : vector<16x64xf32> to vector<16xf32>
    %286 = vector.shape_cast %285 : vector<16xf32> to vector<16x1xf32>
    %cst_83 = arith.constant 6.400000e+01 : f32
    %287 = vector.broadcast %cst_83 : f32 to vector<16x1xf32>
    %288 = arith.divf %286, %287 : vector<16x1xf32>
    %289 = vector.broadcast %281 : vector<16x1xf32> to vector<16x64xf32>
    %290 = arith.subf %273, %289 : vector<16x64xf32>
    %cst_84 = arith.constant 9.99999974E-6 : f32
    %291 = vector.broadcast %cst_84 : f32 to vector<16x1xf32>
    %292 = arith.addf %288, %291 : vector<16x1xf32>
    %293 = math.rsqrt %292 : vector<16x1xf32>
    %294 = vector.broadcast %293 : vector<16x1xf32> to vector<16x64xf32>
    %295 = arith.mulf %290, %294 : vector<16x64xf32>
    %296 = vector.broadcast %275 : vector<1x64xf32> to vector<16x64xf32>
    %297 = arith.mulf %295, %296 : vector<16x64xf32>
    %298 = vector.broadcast %277 : vector<1x64xf32> to vector<16x64xf32>
    %299 = arith.addf %297, %298 : vector<16x64xf32>
    %300 = arith.truncf %299 : vector<16x64xf32> to vector<16x64xbf16>
    %c1_85 = arith.constant 1 : index
    %c0_86 = arith.constant 0 : index
    %c0_87 = arith.constant 0 : index
    %301 = vector.load %arg7[%c1_85, %c0_86, %c0_87] : memref<2x64x256xbf16, #tpu.memory_space<vmem>>, vector<1x64x256xbf16>
    %302 = vector.shape_cast %301 : vector<1x64x256xbf16> to vector<64x256xbf16>
    %cst_88 = arith.constant dense<0.000000e+00> : vector<16x256xf32>
    %303 = tpu.matmul %300, %302, %cst_88 {dimension_numbers = #tpu.dot_dimension_numbers<[1], [0], [0], [1], [0, 0, 1, 1], [], []>} : vector<16x64xbf16>, vector<64x256xbf16>, vector<16x256xf32> -> vector<16x256xf32>
    %c1_89 = arith.constant 1 : index
    %c0_90 = arith.constant 0 : index
    %c0_91 = arith.constant 0 : index
    %304 = vector.load %arg8[%c1_89, %c0_90, %c0_91] : memref<2x1x256xf32, #tpu.memory_space<vmem>>, vector<1x1x256xf32>
    %305 = vector.shape_cast %304 : vector<1x1x256xf32> to vector<1x256xf32>
    %306 = vector.broadcast %305 : vector<1x256xf32> to vector<16x256xf32>
    %307 = arith.addf %303, %306 : vector<16x256xf32>
    %cst_92 = arith.constant 0.000000e+00 : f32
    %308 = vector.broadcast %cst_92 : f32 to vector<16x256xf32>
    %309 = arith.maximumf %307, %308 : vector<16x256xf32>
    %310 = arith.truncf %309 : vector<16x256xf32> to vector<16x256xbf16>
    %c1_93 = arith.constant 1 : index
    %c0_94 = arith.constant 0 : index
    %c0_95 = arith.constant 0 : index
    %311 = vector.load %arg9[%c1_93, %c0_94, %c0_95] : memref<2x256x64xbf16, #tpu.memory_space<vmem>>, vector<1x256x64xbf16>
    %312 = vector.shape_cast %311 : vector<1x256x64xbf16> to vector<256x64xbf16>
    %cst_96 = arith.constant dense<0.000000e+00> : vector<16x64xf32>
    %313 = tpu.matmul %310, %312, %cst_96 {dimension_numbers = #tpu.dot_dimension_numbers<[1], [0], [0], [1], [0, 0, 1, 1], [], []>} : vector<16x256xbf16>, vector<256x64xbf16>, vector<16x64xf32> -> vector<16x64xf32>
    %c1_97 = arith.constant 1 : index
    %c0_98 = arith.constant 0 : index
    %c0_99 = arith.constant 0 : index
    %314 = vector.load %arg10[%c1_97, %c0_98, %c0_99] : memref<2x1x64xf32, #tpu.memory_space<vmem>>, vector<1x1x64xf32>
    %315 = vector.shape_cast %314 : vector<1x1x64xf32> to vector<1x64xf32>
    %316 = vector.broadcast %315 : vector<1x64xf32> to vector<16x64xf32>
    %317 = arith.addf %313, %316 : vector<16x64xf32>
    %318 = arith.addf %299, %317 : vector<16x64xf32>
    %c1_100 = arith.constant 1 : index
    %c0_101 = arith.constant 0 : index
    %c0_102 = arith.constant 0 : index
    %319 = vector.load %arg11[%c1_100, %c0_101, %c0_102] : memref<2x1x64xf32, #tpu.memory_space<vmem>>, vector<1x1x64xf32>
    %320 = vector.shape_cast %319 : vector<1x1x64xf32> to vector<1x64xf32>
    %c1_103 = arith.constant 1 : index
    %c0_104 = arith.constant 0 : index
    %c0_105 = arith.constant 0 : index
    %321 = vector.load %arg12[%c1_103, %c0_104, %c0_105] : memref<2x1x64xf32, #tpu.memory_space<vmem>>, vector<1x1x64xf32>
    %322 = vector.shape_cast %321 : vector<1x1x64xf32> to vector<1x64xf32>
    %cst_106 = arith.constant dense<0.000000e+00> : vector<16xf32>
    %323 = vector.multi_reduction <add>, %318, %cst_106 [1] : vector<16x64xf32> to vector<16xf32>
    %324 = vector.shape_cast %323 : vector<16xf32> to vector<16x1xf32>
    %cst_107 = arith.constant 6.400000e+01 : f32
    %325 = vector.broadcast %cst_107 : f32 to vector<16x1xf32>
    %326 = arith.divf %324, %325 : vector<16x1xf32>
    %327 = vector.broadcast %326 : vector<16x1xf32> to vector<16x64xf32>
    %328 = arith.subf %318, %327 : vector<16x64xf32>
    %329 = arith.mulf %328, %328 : vector<16x64xf32>
    %cst_108 = arith.constant dense<0.000000e+00> : vector<16xf32>
    %330 = vector.multi_reduction <add>, %329, %cst_108 [1] : vector<16x64xf32> to vector<16xf32>
    %331 = vector.shape_cast %330 : vector<16xf32> to vector<16x1xf32>
    %cst_109 = arith.constant 6.400000e+01 : f32
    %332 = vector.broadcast %cst_109 : f32 to vector<16x1xf32>
    %333 = arith.divf %331, %332 : vector<16x1xf32>
    %334 = vector.broadcast %326 : vector<16x1xf32> to vector<16x64xf32>
    %335 = arith.subf %318, %334 : vector<16x64xf32>
    %cst_110 = arith.constant 9.99999974E-6 : f32
    %336 = vector.broadcast %cst_110 : f32 to vector<16x1xf32>
    %337 = arith.addf %333, %336 : vector<16x1xf32>
    %338 = math.rsqrt %337 : vector<16x1xf32>
    %339 = vector.broadcast %338 : vector<16x1xf32> to vector<16x64xf32>
    %340 = arith.mulf %335, %339 : vector<16x64xf32>
    %341 = vector.broadcast %320 : vector<1x64xf32> to vector<16x64xf32>
    %342 = arith.mulf %340, %341 : vector<16x64xf32>
    %343 = vector.broadcast %322 : vector<1x64xf32> to vector<16x64xf32>
    %344 = arith.addf %342, %343 : vector<16x64xf32>
    %345 = arith.truncf %344 : vector<16x64xf32> to vector<16x64xbf16>
    %c0_111 = arith.constant 0 : index
    %c0_112 = arith.constant 0 : index
    %346 = vector.load %arg13[%c0_111, %c0_112] : memref<64x64xbf16, #tpu.memory_space<vmem>>, vector<64x64xbf16>
    %cst_113 = arith.constant dense<0.000000e+00> : vector<16x64xf32>
    %347 = tpu.matmul %345, %346, %cst_113 {dimension_numbers = #tpu.dot_dimension_numbers<[1], [0], [0], [1], [0, 0, 1, 1], [], []>} : vector<16x64xbf16>, vector<64x64xbf16>, vector<16x64xf32> -> vector<16x64xf32>
    %c0_114 = arith.constant 0 : index
    %c0_115 = arith.constant 0 : index
    %348 = vector.load %arg14[%c0_114, %c0_115] : memref<1x64xf32, #tpu.memory_space<vmem>>, vector<1x64xf32>
    %349 = vector.broadcast %348 : vector<1x64xf32> to vector<16x64xf32>
    %350 = arith.addf %347, %349 : vector<16x64xf32>
    %cst_116 = arith.constant 0.000000e+00 : f32
    %351 = vector.broadcast %cst_116 : f32 to vector<16x64xf32>
    %352 = arith.maximumf %350, %351 : vector<16x64xf32>
    %353 = arith.truncf %352 : vector<16x64xf32> to vector<16x64xbf16>
    %c0_117 = arith.constant 0 : index
    %c0_118 = arith.constant 0 : index
    %354 = vector.load %arg15[%c0_117, %c0_118] : memref<64x169xbf16, #tpu.memory_space<vmem>>, vector<64x169xbf16>
    %cst_119 = arith.constant dense<0.000000e+00> : vector<16x169xf32>
    %355 = tpu.matmul %353, %354, %cst_119 {dimension_numbers = #tpu.dot_dimension_numbers<[1], [0], [0], [1], [0, 0, 1, 1], [], []>} : vector<16x64xbf16>, vector<64x169xbf16>, vector<16x169xf32> -> vector<16x169xf32>
    %c0_120 = arith.constant 0 : index
    %c0_121 = arith.constant 0 : index
    %356 = vector.load %arg16[%c0_120, %c0_121] : memref<1x169xf32, #tpu.memory_space<vmem>>, vector<1x169xf32>
    %357 = vector.broadcast %356 : vector<1x169xf32> to vector<16x169xf32>
    %358 = arith.addf %355, %357 : vector<16x169xf32>
    %c0_122 = arith.constant 0 : index
    %c0_123 = arith.constant 0 : index
    %359 = vector.load %arg17[%c0_122, %c0_123] : memref<16x169xf32, #tpu.memory_space<vmem>>, vector<16x169xf32>
    tpu.vector_store %arg17[%c0_122, %c0_123], %358 {strides = array<i32>} : memref<16x169xf32, #tpu.memory_space<vmem>>, vector<16x169xf32>,
    return
  }
}

</mosaic_0001>

<llo_original>
// kernel: tpu_custom_call.1
$region0: #{tpu_custom_call.1}
  #allocation0 [shape = 'u32[]', space=smem, size = 0x4, offset = 0x4, fixed_abs, tag = 'smem constant byte address 0x4 - core index']
  #allocation1 [shape = 'u32[72,128]{1,0:T(1,128)}', space=vmem, size = 0x9000, scoped, tag = 'internal scratch']
  %s0 = inlined_call_operand.hbm [shape: f32[16,64], index: 0, kind: input, shape index: {}]
  %s1 = inlined_call_operand.vmem [shape: bf16[2,64,192], index: 1, kind: input, shape index: {}]
  %s2 = inlined_call_operand.hbm [shape: f32[2,1,192], index: 2, kind: input, shape index: {}]
  %s3 = inlined_call_operand.vmem [shape: bf16[2,64,64], index: 3, kind: input, shape index: {}]
  %s4 = inlined_call_operand.hbm [shape: f32[2,1,64], index: 4, kind: input, shape index: {}]
  %s5 = inlined_call_operand.hbm [shape: f32[2,1,64], index: 5, kind: input, shape index: {}]
  %s6 = inlined_call_operand.hbm [shape: f32[2,1,64], index: 6, kind: input, shape index: {}]
  %s7 = inlined_call_operand.vmem [shape: bf16[2,64,256], index: 7, kind: input, shape index: {}]
  %s8 = inlined_call_operand.vmem [shape: f32[2,1,256], index: 8, kind: input, shape index: {}]
  %s9 = inlined_call_operand.vmem [shape: bf16[2,256,64], index: 9, kind: input, shape index: {}]
  %s10 = inlined_call_operand.vmem [shape: f32[2,1,64], index: 10, kind: input, shape index: {}]
  %s11 = inlined_call_operand.vmem [shape: f32[2,1,64], index: 11, kind: input, shape index: {}]
  %s12 = inlined_call_operand.hbm [shape: f32[2,1,64], index: 12, kind: input, shape index: {}]
  %s13 = inlined_call_operand.hbm [shape: bf16[64,64], index: 13, kind: input, shape index: {}]
  %s14 = inlined_call_operand.vmem [shape: f32[1,64], index: 14, kind: input, shape index: {}]
  %s15 = inlined_call_operand.vmem [shape: bf16[64,169], index: 15, kind: input, shape index: {}]
  %s16 = inlined_call_operand.vmem [shape: f32[1,169], index: 16, kind: input, shape index: {}]
  %s17 = inlined_call_operand.hbm [shape: f32[16,169], index: 17, kind: output, shape index: {}]
  %s18 = sld [smem:[#allocation0]]
  $region106: #{tpu_custom_call.1} parent=0
    _
  %s20 = ssub.s32 1, %s18
  %s21 = scalar_select 0, %s20, %s18
  $region1: #{tpu_custom_call.1} parent=0
    #allocation2 [shape = 'u8[8192]{0}', space=vmem, size = 0x2000, scoped, tag = 'input window, operand 0, single buffered']
    #allocation3 [shape = 's32[1]{0}', space=sflag, size = 0x4, scoped, tag = 'scoped memory for tpu_custom_call.1']
    #allocation4 [shape = 's32[1]{0}', space=sflag, size = 0x4, scoped, tag = 'scoped memory for tpu_custom_call.1']
    #allocation5 [shape = 'u8[2048]{0}', space=vmem, size = 0x800, scoped, tag = 'input window, operand 2, single buffered']
    #allocation6 [shape = 's32[1]{0}', space=sflag, size = 0x4, scoped, tag = 'scoped memory for tpu_custom_call.1']
    #allocation7 [shape = 'u8[1024]{0}', space=vmem, size = 0x400, scoped, tag = 'input window, operand 4, single buffered']
    #allocation8 [shape = 'u8[1024]{0}', space=vmem, size = 0x400, scoped, tag = 'input window, operand 5, single buffered']
    #allocation9 [shape = 's32[1]{0}', space=sflag, size = 0x4, scoped, tag = 'scoped memory for tpu_custom_call.1']
    #allocation10 [shape = 'u8[1024]{0}', space=vmem, size = 0x400, scoped, tag = 'input window, operand 6, single buffered']
    #allocation11 [shape = 'u8[1024]{0}', space=vmem, size = 0x400, scoped, tag = 'input window, operand 12, single buffered']
    #allocation12 [shape = 's32[1]{0}', space=sflag, size = 0x4, scoped, tag = 'scoped memory for tpu_custom_call.1']
    #allocation13 [shape = 'u8[16384]{0}', space=vmem, size = 0x4000, scoped, tag = 'input window, operand 13, single buffered']
    #allocation14 [shape = 'u8[16384]{0}', space=vmem, size = 0x4000, scoped, tag = 'output window, operand 0, single buffered']
    %22 = vsyncpa [#allocation3], 0
    %23 = vsyncpa [#allocation6], 0
    %24 = vsyncpa [#allocation9], 0
    %25 = vsyncpa [#allocation12], 0
    %26 = vsyncpa [#allocation4], 0
    // Predicated region
    $region2: #{tpu_custom_call.1} parent=1 // pred_check
      _
    $region3: #{tpu_custom_call.1} parent=1 // pred_check_branch
      %28 = sbr.rel (0) target = $region5
    $region4: #{tpu_custom_call.1} parent=1 // pred_region
      %30 = vsyncadd [#allocation3], 0
      %s31 = sshll.u32 %s0, 4
      %s32 = int_to_ptr.hbm [resolvable:$true] %s31
      %s33 = sshll.u32 [#allocation2], 4
      %s34 = int_to_ptr.vmem [resolvable:$true] %s33
      %39 = dma.hbm_to_vmem [thread:$0]  %s32, 256, %s34, [#allocation3], 128, 128, 8
    $region5: #{tpu_custom_call.1} parent=1 // pred_fallthru
      _
    // Predicated region
    $region6: #{tpu_custom_call.1} parent=1 // pred_check
      _
    $region7: #{tpu_custom_call.1} parent=1 // pred_check_branch
      %41 = sbr.rel (0) target = $region9
    $region8: #{tpu_custom_call.1} parent=1 // pred_region
      _
    $region9: #{tpu_custom_call.1} parent=1 // pred_fallthru
      _
    // Predicated region
    $region10: #{tpu_custom_call.1} parent=1 // pred_check
      _
    $region11: #{tpu_custom_call.1} parent=1 // pred_check_branch
      %43 = sbr.rel (0) target = $region13
    $region12: #{tpu_custom_call.1} parent=1 // pred_region
      %45 = vsyncadd [#allocation6], 0
      %s46 = sshll.u32 %s2, 4
      %s47 = int_to_ptr.hbm [resolvable:$true] %s46
      %s48 = sshll.u32 [#allocation5], 4
      %s49 = int_to_ptr.vmem [resolvable:$true] %s48
      %54 = dma.hbm_to_vmem [thread:$0]  %s47, 64, %s49, [#allocation6], 32, 32, 2
    $region13: #{tpu_custom_call.1} parent=1 // pred_fallthru
      _
    // Predicated region
    $region14: #{tpu_custom_call.1} parent=1 // pred_check
      _
    $region15: #{tpu_custom_call.1} parent=1 // pred_check_branch
      %56 = sbr.rel (0) target = $region17
    $region16: #{tpu_custom_call.1} parent=1 // pred_region
      _
    $region17: #{tpu_custom_call.1} parent=1 // pred_fallthru
      _
    // Predicated region
    $region18: #{tpu_custom_call.1} parent=1 // pred_check
      _
    $region19: #{tpu_custom_call.1} parent=1 // pred_check_branch
      %58 = sbr.rel (0) target = $region21
    $region20: #{tpu_custom_call.1} parent=1 // pred_region
      %60 = vsyncadd [#allocation6], 0
      %s61 = sshll.u32 %s4, 4
      %s62 = int_to_ptr.hbm [resolvable:$true] %s61
      %s63 = sshll.u32 [#allocation7], 4
      %s64 = int_to_ptr.vmem [resolvable:$true] %s63
      %69 = dma.hbm_to_vmem [thread:$0]  %s62, 32, %s64, [#allocation6], 16, 16, 1
    $region21: #{tpu_custom_call.1} parent=1 // pred_fallthru
      _
    // Predicated region
    $region22: #{tpu_custom_call.1} parent=1 // pred_check
      _
    $region23: #{tpu_custom_call.1} parent=1 // pred_check_branch
      %71 = sbr.rel (0) target = $region25
    $region24: #{tpu_custom_call.1} parent=1 // pred_region
      %73 = vsyncadd [#allocation9], 0
      %s74 = sshll.u32 %s5, 4
      %s75 = int_to_ptr.hbm [resolvable:$true] %s74
      %s76 = sshll.u32 [#allocation8], 4
      %s77 = int_to_ptr.vmem [resolvable:$true] %s76
      %82 = dma.hbm_to_vmem [thread:$0]  %s75, 32, %s77, [#allocation9], 16, 16, 1
    $region25: #{tpu_custom_call.1} parent=1 // pred_fallthru
      _
    // Predicated region
    $region26: #{tpu_custom_call.1} parent=1 // pred_check
      _
    $region27: #{tpu_custom_call.1} parent=1 // pred_check_branch
      %84 = sbr.rel (0) target = $region29
    $region28: #{tpu_custom_call.1} parent=1 // pred_region
      %86 = vsyncadd [#allocation9], 0
      %s87 = sshll.u32 %s6, 4
      %s88 = int_to_ptr.hbm [resolvable:$true] %s87
      %s89 = sshll.u32 [#allocation10], 4
      %s90 = int_to_ptr.vmem [resolvable:$true] %s89
      %95 = dma.hbm_to_vmem [thread:$0]  %s88, 32, %s90, [#allocation9], 16, 16, 1
    $region29: #{tpu_custom_call.1} parent=1 // pred_fallthru
      _
    // Predicated region
    $region30: #{tpu_custom_call.1} parent=1 // pred_check
      _
    $region31: #{tpu_custom_call.1} parent=1 // pred_check_branch
      %97 = sbr.rel (0) target = $region33
    $region32: #{tpu_custom_call.1} parent=1 // pred_region
      _
    $region33: #{tpu_custom_call.1} parent=1 // pred_fallthru
      _
    // Predicated region
    $region34: #{tpu_custom_call.1} parent=1 // pred_check
      _
    $region35: #{tpu_custom_call.1} parent=1 // pred_check_branch
      %99 = sbr.rel (0) target = $region37
    $region36: #{tpu_custom_call.1} parent=1 // pred_region
      _
    $region37: #{tpu_custom_call.1} parent=1 // pred_fallthru
      _
    // Predicated region
    $region38: #{tpu_custom_call.1} parent=1 // pred_check
      _
    $region39: #{tpu_custom_call.1} parent=1 // pred_check_branch
      %101 = sbr.rel (0) target = $region41
    $region40: #{tpu_custom_call.1} parent=1 // pred_region
      _
    $region41: #{tpu_custom_call.1} parent=1 // pred_fallthru
      _
    // Predicated region
    $region42: #{tpu_custom_call.1} parent=1 // pred_check
      _
    $region43: #{tpu_custom_call.1} parent=1 // pred_check_branch
      %103 = sbr.rel (0) target = $region45
    $region44: #{tpu_custom_call.1} parent=1 // pred_region
      _
    $region45: #{tpu_custom_call.1} parent=1 // pred_fallthru
      _
    // Predicated region
    $region46: #{tpu_custom_call.1} parent=1 // pred_check
      _
    $region47: #{tpu_custom_call.1} parent=1 // pred_check_branch
      %105 = sbr.rel (0) target = $region49
    $region48: #{tpu_custom_call.1} parent=1 // pred_region
      _
    $region49: #{tpu_custom_call.1} parent=1 // pred_fallthru
      _
    // Predicated region
    $region50: #{tpu_custom_call.1} parent=1 // pred_check
      _
    $region51: #{tpu_custom_call.1} parent=1 // pred_check_branch
      %107 = sbr.rel (0) target = $region53
    $region52: #{tpu_custom_call.1} parent=1 // pred_region
      %109 = vsyncadd [#allocation12], 0
      %s110 = sshll.u32 %s12, 4
      %s111 = int_to_ptr.hbm [resolvable:$true] %s110
      %s112 = sshll.u32 [#allocation11], 4
      %s113 = int_to_ptr.vmem [resolvable:$true] %s112
      %118 = dma.hbm_to_vmem [thread:$0]  %s111, 32, %s113, [#allocation12], 16, 16, 1
    $region53: #{tpu_custom_call.1} parent=1 // pred_fallthru
      _
    // Predicated region
    $region54: #{tpu_custom_call.1} parent=1 // pred_check
      _
    $region55: #{tpu_custom_call.1} parent=1 // pred_check_branch
      %120 = sbr.rel (0) target = $region57
    $region56: #{tpu_custom_call.1} parent=1 // pred_region
      %122 = vsyncadd [#allocation12], 0
      %s123 = sshll.u32 %s13, 4
      %s124 = int_to_ptr.hbm [resolvable:$true] %s123
      %s125 = sshll.u32 [#allocation13], 4
      %s126 = int_to_ptr.vmem [resolvable:$true] %s125
      %131 = dma.hbm_to_vmem [thread:$0]  %s124, 512, %s126, [#allocation12], 64, 64, 4
    $region57: #{tpu_custom_call.1} parent=1 // pred_fallthru
      _
    // Predicated region
    $region58: #{tpu_custom_call.1} parent=1 // pred_check
      _
    $region59: #{tpu_custom_call.1} parent=1 // pred_check_branch
      %133 = sbr.rel (0) target = $region61
    $region60: #{tpu_custom_call.1} parent=1 // pred_region
      _
    $region61: #{tpu_custom_call.1} parent=1 // pred_fallthru
      _
    // Predicated region
    $region62: #{tpu_custom_call.1} parent=1 // pred_check
      _
    $region63: #{tpu_custom_call.1} parent=1 // pred_check_branch
      %135 = sbr.rel (0) target = $region65
    $region64: #{tpu_custom_call.1} parent=1 // pred_region
      _
    $region65: #{tpu_custom_call.1} parent=1 // pred_fallthru
      _
    // Predicated region
    $region66: #{tpu_custom_call.1} parent=1 // pred_check
      _
    $region67: #{tpu_custom_call.1} parent=1 // pred_check_branch
      %137 = sbr.rel (0) target = $region69
    $region68: #{tpu_custom_call.1} parent=1 // pred_region
      _
    $region69: #{tpu_custom_call.1} parent=1 // pred_fallthru
      _
    // Predicated region
    $region70: #{tpu_custom_call.1} parent=1 // pred_check
      _
    $region71: #{tpu_custom_call.1} parent=1 // pred_check_branch
      %139 = sbr.rel (0) target = $region73
    $region72: #{tpu_custom_call.1} parent=1 // pred_region
      %141 = dma.done [#allocation3], 256
    $region73: #{tpu_custom_call.1} parent=1 // pred_fallthru
      _
    // Predicated region
    $region74: #{tpu_custom_call.1} parent=1 // pred_check
      _
    $region75: #{tpu_custom_call.1} parent=1 // pred_check_branch
      %143 = sbr.rel (0) target = $region77
    $region76: #{tpu_custom_call.1} parent=1 // pred_region
      %145 = dma.done [#allocation6], 64
    $region77: #{tpu_custom_call.1} parent=1 // pred_fallthru
      _
    // Predicated region
    $region78: #{tpu_custom_call.1} parent=1 // pred_check
      _
    $region79: #{tpu_custom_call.1} parent=1 // pred_check_branch
      %147 = sbr.rel (0) target = $region81
    $region80: #{tpu_custom_call.1} parent=1 // pred_region
      %149 = dma.done [#allocation6], 32
    $region81: #{tpu_custom_call.1} parent=1 // pred_fallthru
      _
    // Predicated region
    $region82: #{tpu_custom_call.1} parent=1 // pred_check
      _
    $region83: #{tpu_custom_call.1} parent=1 // pred_check_branch
      %151 = sbr.rel (0) target = $region85
    $region84: #{tpu_custom_call.1} parent=1 // pred_region
      %153 = dma.done [#allocation9], 32
    $region85: #{tpu_custom_call.1} parent=1 // pred_fallthru
      _
    // Predicated region
    $region86: #{tpu_custom_call.1} parent=1 // pred_check
      _
    $region87: #{tpu_custom_call.1} parent=1 // pred_check_branch
      %155 = sbr.rel (0) target = $region89
    $region88: #{tpu_custom_call.1} parent=1 // pred_region
      %157 = dma.done [#allocation9], 32
    $region89: #{tpu_custom_call.1} parent=1 // pred_fallthru
      _
    // Predicated region
    $region90: #{tpu_custom_call.1} parent=1 // pred_check
      _
    $region91: #{tpu_custom_call.1} parent=1 // pred_check_branch
      %159 = sbr.rel (0) target = $region93
    $region92: #{tpu_custom_call.1} parent=1 // pred_region
      %161 = dma.done [#allocation12], 32
    $region93: #{tpu_custom_call.1} parent=1 // pred_fallthru
      _
    // Predicated region
    $region94: #{tpu_custom_call.1} parent=1 // pred_check
      _
    $region95: #{tpu_custom_call.1} parent=1 // pred_check_branch
      %163 = sbr.rel (0) target = $region97
    $region96: #{tpu_custom_call.1} parent=1 // pred_region
      %165 = dma.done [#allocation12], 512
    $region97: #{tpu_custom_call.1} parent=1 // pred_fallthru
      _
    %v167 = vld [vmem:[#allocation2] sm:$0xff]
    %v168 = vld [vmem:[#allocation2 + $0x8] sm:$0xff]
    %v169 = vpack.c.bf16 %v168, %v167
    %v170 = vld [vmem:[%s1] sm:$0xff]
    %v171 = vld [vmem:[%s1 + $0x8] sm:$0xff]
    %v172 = vld [vmem:[%s1 + $0x10] sm:$0xff]
    %v173 = vld [vmem:[%s1 + $0x18] sm:$0xff]
    %v174 = vld [vmem:[%s1 + $0x20] sm:$0xff]
    %v175 = vld [vmem:[%s1 + $0x28] sm:$0xff]
    %v176 = vld [vmem:[%s1 + $0x30] sm:$0xff]
    %v177 = vld [vmem:[%s1 + $0x38] sm:$0xff]
    %v178 = vld [vmem:[#allocation5] sm:$0x3]
    %v180 = vperm.slane %v178, 0
    %v181 = vperm.slane %v178, 1
    %v192 = vunpack.c.l.b16 %v170
    %v193 = vunpack.c.h.b16 %v170
    %v194 = vunpack.c.l.b16 %v171
    %v195 = vunpack.c.h.b16 %v171
    %v196 = vunpack.c.l.b16 %v172
    %v197 = vunpack.c.h.b16 %v172
    %v198 = vunpack.c.l.b16 %v173
    %v199 = vunpack.c.h.b16 %v173
    %v200 = vunpack.c.l.b16 %v174
    %v201 = vunpack.c.h.b16 %v174
    %v202 = vunpack.c.l.b16 %v175
    %v203 = vunpack.c.h.b16 %v175
    %v204 = vunpack.c.l.b16 %v176
    %v205 = vunpack.c.h.b16 %v176
    %v206 = vunpack.c.l.b16 %v177
    %v207 = vunpack.c.h.b16 %v177
    %v208 = vpack.c.b16 %v194, %v192
    %v209 = vpack.c.b16 %v195, %v193
    %v210 = vpack.c.b16 %v198, %v196
    %v211 = vpack.c.b16 %v199, %v197
    %v212 = vpack.c.b16 %v202, %v200
    %v213 = vpack.c.b16 %v203, %v201
    %v214 = vpack.c.b16 %v206, %v204
    %v215 = vpack.c.b16 %v207, %v205
    %vm224 = vcmask 523264
    %v226 = vsel %vm224, %v169, 0
    %228 = vmatpush.bf16.msra.mxu0 0
    %229 = vmatpush.bf16.msra.mxu0 0
    %230 = vmatpush.bf16.msra.mxu0 0
    %231 = vmatpush.bf16.msra.mxu0 0
    %232 = vmatpush.bf16.msra.mxu0 %v214
    %233 = vmatpush.bf16.msra.mxu0 %v212
    %234 = vmatpush.bf16.msra.mxu0 %v210
    %235 = vmatpush.bf16.msra.mxu0 %v208
    %236 = vmatmul.bf16.gmra.mxu0 %v226
    %v237 = vpop.f32.mrf.mxu0
    %v238 = vadd.f32 %v180, %v237
    %v239 = vpop.f32.mrf.mxu0
    %v240 = vadd.f32 %v180, %v239
    %241 = vdwg.mxu0
    %242 = vmatpush.bf16.msra.mxu0 0
    %243 = vmatpush.bf16.msra.mxu0 0
    %244 = vmatpush.bf16.msra.mxu0 0
    %245 = vmatpush.bf16.msra.mxu0 0
    %246 = vmatpush.bf16.msra.mxu0 %v215
    %247 = vmatpush.bf16.msra.mxu0 %v213
    %248 = vmatpush.bf16.msra.mxu0 %v211
    %249 = vmatpush.bf16.msra.mxu0 %v209
    %250 = vmatmul.bf16.gmra.mxu0 %v226
    %v251 = vpop.f32.mrf.mxu0
    %v252 = vadd.f32 %v181, %v251
    %v253 = vpop.f32.mrf.mxu0
    %v254 = vadd.f32 %v181, %v253
    %255 = vdwg.mxu0
    %257 = vrot.lane.b32.xlu0 %v238, 112
    %v258 = vpop.permute.xlu0 %257
    %259 = vrot.lane.b32.xlu0 %v238, 96
    %v260 = vpop.permute.xlu0 %259
    %261 = vrot.lane.b32.xlu0 %v238, 80
    %v262 = vpop.permute.xlu0 %261
    %264 = vrot.lane.b32.xlu0 %v240, 112
    %v265 = vpop.permute.xlu0 %264
    %266 = vrot.lane.b32.xlu0 %v240, 96
    %v267 = vpop.permute.xlu0 %266
    %268 = vrot.lane.b32.xlu0 %v240, 80
    %v269 = vpop.permute.xlu0 %268
    %271 = vrot.lane.b32.xlu0 %v252, 112
    %v272 = vpop.permute.xlu0 %271
    %274 = vrot.lane.b32.xlu0 %v252, 96
    %v275 = vpop.permute.xlu0 %274
    %277 = vrot.lane.b32.xlu0 %v252, 80
    %v278 = vpop.permute.xlu0 %277
    %281 = vrot.lane.b32.xlu0 %v254, 112
    %v282 = vpop.permute.xlu0 %281
    %284 = vrot.lane.b32.xlu0 %v254, 96
    %v285 = vpop.permute.xlu0 %284
    %287 = vrot.lane.b32.xlu0 %v254, 80
    %v288 = vpop.permute.xlu0 %287
    %290 = vrot.lane.b32.xlu0 %v238, 64
    %v291 = vpop.permute.xlu0 %290
    %vm292 = vcmask 130048
    %v293 = vsel %vm292, %v238, 0
    %v295 = vsel %vm292, %v291, 0
    %297 = vmatpush.xpose.msra.mxu0 0.0
    %298 = vmatpush.xpose.msra.mxu0 0.0
    %299 = vmatpush.xpose.msra.mxu0 0.0
    %300 = vmatpush.xpose.msra.mxu0 0.0
    %301 = vmatpush.xpose.msra.mxu0 0.0
    %302 = vmatpush.xpose.msra.mxu0 0.0
    %303 = vmatpush.xpose.msra.mxu0 0.0
    %304 = vmatpush.xpose.msra.mxu0 0.0
    %305 = vmatpush.xpose.msra.mxu0 0.0
    %306 = vmatpush.xpose.msra.mxu0 0.0
    %307 = vmatpush.xpose.msra.mxu0 0.0
    %308 = vmatpush.xpose.msra.mxu0 0.0
    %309 = vmatpush.xpose.msra.mxu0 0.0
    %310 = vmatpush.xpose.msra.mxu0 0.0
    %311 = vmatpush.xpose.msra.mxu0 0.0
    %312 = vmatpush.xpose.msra.mxu0 %v295
    %313 = vmatmul.f32.gmra.mxu0 %v293
    %v314 = vpop.f32.mrf.mxu0
    %v315 = vadd.f32 0.0, %v314
    %316 = vdwg.mxu0
    %317 = vrot.lane.b32.xlu0 %v258, 64
    %v318 = vpop.permute.xlu0 %317
    %v319 = vsel %vm292, %v258, 0
    %v321 = vsel %vm292, %v318, 0
    %323 = vmatpush.xpose.msra.mxu0 0.0
    %324 = vmatpush.xpose.msra.mxu0 0.0
    %325 = vmatpush.xpose.msra.mxu0 0.0
    %326 = vmatpush.xpose.msra.mxu0 0.0
    %327 = vmatpush.xpose.msra.mxu0 0.0
    %328 = vmatpush.xpose.msra.mxu0 0.0
    %329 = vmatpush.xpose.msra.mxu0 0.0
    %330 = vmatpush.xpose.msra.mxu0 0.0
    %331 = vmatpush.xpose.msra.mxu0 0.0
    %332 = vmatpush.xpose.msra.mxu0 0.0
    %333 = vmatpush.xpose.msra.mxu0 0.0
    %334 = vmatpush.xpose.msra.mxu0 0.0
    %335 = vmatpush.xpose.msra.mxu0 0.0
    %336 = vmatpush.xpose.msra.mxu0 0.0
    %337 = vmatpush.xpose.msra.mxu0 0.0
    %338 = vmatpush.xpose.msra.mxu0 %v321
    %339 = vmatmul.f32.gmra.mxu0 %v319
    %v340 = vpop.f32.mrf.mxu0
    %v341 = vadd.f32 0.0, %v340
    %342 = vdwg.mxu0
    %343 = vrot.lane.b32.xlu0 %v260, 64
    %v344 = vpop.permute.xlu0 %343
    %v345 = vsel %vm292, %v260, 0
    %v347 = vsel %vm292, %v344, 0
    %349 = vmatpush.xpose.msra.mxu0 0.0
    %350 = vmatpush.xpose.msra.mxu0 0.0
    %351 = vmatpush.xpose.msra.mxu0 0.0
    %352 = vmatpush.xpose.msra.mxu0 0.0
    %353 = vmatpush.xpose.msra.mxu0 0.0
    %354 = vmatpush.xpose.msra.mxu0 0.0
    %355 = vmatpush.xpose.msra.mxu0 0.0
    %356 = vmatpush.xpose.msra.mxu0 0.0
    %357 = vmatpush.xpose.msra.mxu0 0.0
    %358 = vmatpush.xpose.msra.mxu0 0.0
    %359 = vmatpush.xpose.msra.mxu0 0.0
    %360 = vmatpush.xpose.msra.mxu0 0.0
    %361 = vmatpush.xpose.msra.mxu0 0.0
    %362 = vmatpush.xpose.msra.mxu0 0.0
    %363 = vmatpush.xpose.msra.mxu0 0.0
    %364 = vmatpush.xpose.msra.mxu0 %v347
    %365 = vmatmul.f32.gmra.mxu0 %v345
    %v366 = vpop.f32.mrf.mxu0
    %v367 = vadd.f32 0.0, %v366
    %368 = vdwg.mxu0
    %369 = vrot.lane.b32.xlu0 %v262, 64
    %v370 = vpop.permute.xlu0 %369
    %v371 = vsel %vm292, %v262, 0
    %v373 = vsel %vm292, %v370, 0
    %375 = vmatpush.xpose.msra.mxu0 0.0
    %376 = vmatpush.xpose.msra.mxu0 0.0
    %377 = vmatpush.xpose.msra.mxu0 0.0
    %378 = vmatpush.xpose.msra.mxu0 0.0
    %379 = vmatpush.xpose.msra.mxu0 0.0
    %380 = vmatpush.xpose.msra.mxu0 0.0
    %381 = vmatpush.xpose.msra.mxu0 0.0
    %382 = vmatpush.xpose.msra.mxu0 0.0
    %383 = vmatpush.xpose.msra.mxu0 0.0
    %384 = vmatpush.xpose.msra.mxu0 0.0
    %385 = vmatpush.xpose.msra.mxu0 0.0
    %386 = vmatpush.xpose.msra.mxu0 0.0
    %387 = vmatpush.xpose.msra.mxu0 0.0
    %388 = vmatpush.xpose.msra.mxu0 0.0
    %389 = vmatpush.xpose.msra.mxu0 0.0
    %390 = vmatpush.xpose.msra.mxu0 %v373
    %391 = vmatmul.f32.gmra.mxu0 %v371
    %v392 = vpop.f32.mrf.mxu0
    %v393 = vadd.f32 0.0, %v392
    %394 = vdwg.mxu0
    %395 = vrot.lane.b32.xlu0 %v240, 64
    %v396 = vpop.permute.xlu0 %395
    %v397 = vsel %vm292, %v240, 0
    %v399 = vsel %vm292, %v396, 0
    %401 = vmatpush.xpose.msra.mxu0 0.0
    %402 = vmatpush.xpose.msra.mxu0 0.0
    %403 = vmatpush.xpose.msra.mxu0 0.0
    %404 = vmatpush.xpose.msra.mxu0 0.0
    %405 = vmatpush.xpose.msra.mxu0 0.0
    %406 = vmatpush.xpose.msra.mxu0 0.0
    %407 = vmatpush.xpose.msra.mxu0 0.0
    %408 = vmatpush.xpose.msra.mxu0 0.0
    %409 = vmatpush.xpose.msra.mxu0 0.0
    %410 = vmatpush.xpose.msra.mxu0 0.0
    %411 = vmatpush.xpose.msra.mxu0 0.0
    %412 = vmatpush.xpose.msra.mxu0 0.0
    %413 = vmatpush.xpose.msra.mxu0 0.0
    %414 = vmatpush.xpose.msra.mxu0 0.0
    %415 = vmatpush.xpose.msra.mxu0 0.0
    %416 = vmatpush.xpose.msra.mxu0 %v399
    %417 = vmatmul.f32.gmra.mxu0 %v397
    %v418 = vpop.f32.mrf.mxu0
    %v419 = vadd.f32 0.0, %v418
    %420 = vdwg.mxu0
    %421 = vrot.lane.b32.xlu0 %v265, 64
    %v422 = vpop.permute.xlu0 %421
    %v423 = vsel %vm292, %v265, 0
    %v425 = vsel %vm292, %v422, 0
    %427 = vmatpush.xpose.msra.mxu0 0.0
    %428 = vmatpush.xpose.msra.mxu0 0.0
    %429 = vmatpush.xpose.msra.mxu0 0.0
    %430 = vmatpush.xpose.msra.mxu0 0.0
    %431 = vmatpush.xpose.msra.mxu0 0.0
    %432 = vmatpush.xpose.msra.mxu0 0.0
    %433 = vmatpush.xpose.msra.mxu0 0.0
    %434 = vmatpush.xpose.msra.mxu0 0.0
    %435 = vmatpush.xpose.msra.mxu0 0.0
    %436 = vmatpush.xpose.msra.mxu0 0.0
    %437 = vmatpush.xpose.msra.mxu0 0.0
    %438 = vmatpush.xpose.msra.mxu0 0.0
    %439 = vmatpush.xpose.msra.mxu0 0.0
    %440 = vmatpush.xpose.msra.mxu0 0.0
    %441 = vmatpush.xpose.msra.mxu0 0.0
    %442 = vmatpush.xpose.msra.mxu0 %v425
    %443 = vmatmul.f32.gmra.mxu0 %v423
    %v444 = vpop.f32.mrf.mxu0
    %v445 = vadd.f32 0.0, %v444
    %446 = vdwg.mxu0
    %447 = vrot.lane.b32.xlu0 %v267, 64
    %v448 = vpop.permute.xlu0 %447
    %v449 = vsel %vm292, %v267, 0
    %v451 = vsel %vm292, %v448, 0
    %453 = vmatpush.xpose.msra.mxu0 0.0
    %454 = vmatpush.xpose.msra.mxu0 0.0
    %455 = vmatpush.xpose.msra.mxu0 0.0
    %456 = vmatpush.xpose.msra.mxu0 0.0
    %457 = vmatpush.xpose.msra.mxu0 0.0
    %458 = vmatpush.xpose.msra.mxu0 0.0
    %459 = vmatpush.xpose.msra.mxu0 0.0
    %460 = vmatpush.xpose.msra.mxu0 0.0
    %461 = vmatpush.xpose.msra.mxu0 0.0
    %462 = vmatpush.xpose.msra.mxu0 0.0
    %463 = vmatpush.xpose.msra.mxu0 0.0
    %464 = vmatpush.xpose.msra.mxu0 0.0
    %465 = vmatpush.xpose.msra.mxu0 0.0
    %466 = vmatpush.xpose.msra.mxu0 0.0
    %467 = vmatpush.xpose.msra.mxu0 0.0
    %468 = vmatpush.xpose.msra.mxu0 %v451
    %469 = vmatmul.f32.gmra.mxu0 %v449
    %v470 = vpop.f32.mrf.mxu0
    %v471 = vadd.f32 0.0, %v470
    %472 = vdwg.mxu0
    %473 = vrot.lane.b32.xlu0 %v269, 64
    %v474 = vpop.permute.xlu0 %473
    %v475 = vsel %vm292, %v269, 0
    %v477 = vsel %vm292, %v474, 0
    %479 = vmatpush.xpose.msra.mxu0 0.0
    %480 = vmatpush.xpose.msra.mxu0 0.0
    %481 = vmatpush.xpose.msra.mxu0 0.0
    %482 = vmatpush.xpose.msra.mxu0 0.0
    %483 = vmatpush.xpose.msra.mxu0 0.0
    %484 = vmatpush.xpose.msra.mxu0 0.0
    %485 = vmatpush.xpose.msra.mxu0 0.0
    %486 = vmatpush.xpose.msra.mxu0 0.0
    %487 = vmatpush.xpose.msra.mxu0 0.0
    %488 = vmatpush.xpose.msra.mxu0 0.0
    %489 = vmatpush.xpose.msra.mxu0 0.0
    %490 = vmatpush.xpose.msra.mxu0 0.0
    %491 = vmatpush.xpose.msra.mxu0 0.0
    %492 = vmatpush.xpose.msra.mxu0 0.0
    %493 = vmatpush.xpose.msra.mxu0 0.0
    %494 = vmatpush.xpose.msra.mxu0 %v477
    %495 = vmatmul.f32.gmra.mxu0 %v475
    %v496 = vpop.f32.mrf.mxu0
    %v497 = vadd.f32 0.0, %v496
    %498 = vdwg.mxu0
    %v499 = vmul.f32 %v315, 0.25
    %v500 = vmul.f32 %v341, 0.25
    %v501 = vmul.f32 %v367, 0.25
    %v502 = vmul.f32 %v393, 0.25
    %v503 = vmul.f32 %v419, 0.25
    %v504 = vmul.f32 %v445, 0.25
    %v505 = vmul.f32 %v471, 0.25
    %v506 = vmul.f32 %v497, 0.25
    %vm507 = vcmask 64512
    %v508 = vsel %vm507, %v499, -inf
    %509 = vmax.xlane.f32.xlu0 %v508
    %v510 = vpop.xlane.xlu0 %509
    %v511 = vsel %vm507, %v500, -inf
    %512 = vmax.xlane.f32.xlu0 %v511
    %v513 = vpop.xlane.xlu0 %512
    %v514 = vsel %vm507, %v501, -inf
    %515 = vmax.xlane.f32.xlu0 %v514
    %v516 = vpop.xlane.xlu0 %515
    %v517 = vsel %vm507, %v502, -inf
    %518 = vmax.xlane.f32.xlu0 %v517
    %v519 = vpop.xlane.xlu0 %518
    %v520 = vsel %vm507, %v503, -inf
    %521 = vmax.xlane.f32.xlu0 %v520
    %v522 = vpop.xlane.xlu0 %521
    %v523 = vsel %vm507, %v504, -inf
    %524 = vmax.xlane.f32.xlu0 %v523
    %v525 = vpop.xlane.xlu0 %524
    %v526 = vsel %vm507, %v505, -inf
    %527 = vmax.xlane.f32.xlu0 %v526
    %v528 = vpop.xlane.xlu0 %527
    %v529 = vsel %vm507, %v506, -inf
    %530 = vmax.xlane.f32.xlu0 %v529
    %v531 = vpop.xlane.xlu0 %530
    %v532 = vsub.f32 %v499, %v510
    %v533 = vsub.f32 %v500, %v513
    %v534 = vsub.f32 %v501, %v516
    %v535 = vsub.f32 %v502, %v519
    %v536 = vsub.f32 %v503, %v522
    %v537 = vsub.f32 %v504, %v525
    %v538 = vsub.f32 %v505, %v528
    %v539 = vsub.f32 %v506, %v531
    %v540 = vmul.f32 %v532, 1.442695
    %v541 = vpow.pop %v540
    %v542 = vmul.f32 %v533, 1.442695
    %v543 = vpow.pop %v542
    %v544 = vmul.f32 %v534, 1.442695
    %v545 = vpow.pop %v544
    %v546 = vmul.f32 %v535, 1.442695
    %v547 = vpow.pop %v546
    %v548 = vmul.f32 %v536, 1.442695
    %v549 = vpow.pop %v548
    %v550 = vmul.f32 %v537, 1.442695
    %v551 = vpow.pop %v550
    %v552 = vmul.f32 %v538, 1.442695
    %v553 = vpow.pop %v552
    %v554 = vmul.f32 %v539, 1.442695
    %v555 = vpow.pop %v554
    %v556 = vsel %vm507, %v541, 0.0
    %557 = vadd.xlane.f32.xlu0 %v556
    %v558 = vpop.xlane.xlu0 %557
    %v559 = vsel %vm507, %v543, 0.0
    %560 = vadd.xlane.f32.xlu0 %v559
    %v561 = vpop.xlane.xlu0 %560
    %v562 = vsel %vm507, %v545, 0.0
    %563 = vadd.xlane.f32.xlu0 %v562
    %v564 = vpop.xlane.xlu0 %563
    %v565 = vsel %vm507, %v547, 0.0
    %566 = vadd.xlane.f32.xlu0 %v565
    %v567 = vpop.xlane.xlu0 %566
    %v568 = vsel %vm507, %v549, 0.0
    %569 = vadd.xlane.f32.xlu0 %v568
    %v570 = vpop.xlane.xlu0 %569
    %v571 = vsel %vm507, %v551, 0.0
    %572 = vadd.xlane.f32.xlu0 %v571
    %v573 = vpop.xlane.xlu0 %572
    %v574 = vsel %vm507, %v553, 0.0
    %575 = vadd.xlane.f32.xlu0 %v574
    %v576 = vpop.xlane.xlu0 %575
    %v577 = vsel %vm507, %v555, 0.0
    %578 = vadd.xlane.f32.xlu0 %v577
    %v579 = vpop.xlane.xlu0 %578
    %v580 = vrcp.pop %v558
    %v581 = vrcp.pop %v561
    %v582 = vrcp.pop %v564
    %v583 = vrcp.pop %v567
    %v584 = vrcp.pop %v570
    %v585 = vrcp.pop %v573
    %v586 = vrcp.pop %v576
    %v587 = vrcp.pop %v579
    %v588 = vmul.f32 %v541, %v580
    %v589 = vmul.f32 %v543, %v581
    %v590 = vmul.f32 %v545, %v582
    %v591 = vmul.f32 %v547, %v583
    %v592 = vmul.f32 %v549, %v584
    %v593 = vmul.f32 %v551, %v585
    %v594 = vmul.f32 %v553, %v586
    %v595 = vmul.f32 %v555, %v587
    %v597 = vsel %vm507, %v588, 0
    %599 = vmatpush.msra.mxu0 0.0
    %600 = vmatpush.msra.mxu0 0.0
    %601 = vmatpush.msra.mxu0 0.0
    %602 = vmatpush.msra.mxu0 0.0
    %603 = vmatpush.msra.mxu0 0.0
    %604 = vmatpush.msra.mxu0 0.0
    %605 = vmatpush.msra.mxu0 0.0
    %606 = vmatpush.msra.mxu0 0.0
    %607 = vmatpush.msra.mxu0 0.0
    %608 = vmatpush.msra.mxu0 0.0
    %609 = vmatpush.msra.mxu0 0.0
    %610 = vmatpush.msra.mxu0 0.0
    %611 = vmatpush.msra.mxu0 0.0
    %612 = vmatpush.msra.mxu0 0.0
    %613 = vmatpush.msra.mxu0 0.0
    %614 = vmatpush.msra.mxu0 %v252
    %615 = vmatmul.f32.gmra.mxu0 %v597
    %v616 = vpop.f32.mrf.mxu0
    %v617 = vadd.f32 0.0, %v616
    %618 = vdwg.mxu0
    %v620 = vsel %vm507, %v589, 0
    %622 = vmatpush.msra.mxu0 0.0
    %623 = vmatpush.msra.mxu0 0.0
    %624 = vmatpush.msra.mxu0 0.0
    %625 = vmatpush.msra.mxu0 0.0
    %626 = vmatpush.msra.mxu0 0.0
    %627 = vmatpush.msra.mxu0 0.0
    %628 = vmatpush.msra.mxu0 0.0
    %629 = vmatpush.msra.mxu0 0.0
    %630 = vmatpush.msra.mxu0 0.0
    %631 = vmatpush.msra.mxu0 0.0
    %632 = vmatpush.msra.mxu0 0.0
    %633 = vmatpush.msra.mxu0 0.0
    %634 = vmatpush.msra.mxu0 0.0
    %635 = vmatpush.msra.mxu0 0.0
    %636 = vmatpush.msra.mxu0 0.0
    %637 = vmatpush.msra.mxu0 %v272
    %638 = vmatmul.f32.gmra.mxu0 %v620
    %v639 = vpop.f32.mrf.mxu0
    %v640 = vadd.f32 0.0, %v639
    %641 = vdwg.mxu0
    %v643 = vsel %vm507, %v590, 0
    %645 = vmatpush.msra.mxu0 0.0
    %646 = vmatpush.msra.mxu0 0.0
    %647 = vmatpush.msra.mxu0 0.0
    %648 = vmatpush.msra.mxu0 0.0
    %649 = vmatpush.msra.mxu0 0.0
    %650 = vmatpush.msra.mxu0 0.0
    %651 = vmatpush.msra.mxu0 0.0
    %652 = vmatpush.msra.mxu0 0.0
    %653 = vmatpush.msra.mxu0 0.0
    %654 = vmatpush.msra.mxu0 0.0
    %655 = vmatpush.msra.mxu0 0.0
    %656 = vmatpush.msra.mxu0 0.0
    %657 = vmatpush.msra.mxu0 0.0
    %658 = vmatpush.msra.mxu0 0.0
    %659 = vmatpush.msra.mxu0 0.0
    %660 = vmatpush.msra.mxu0 %v275
    %661 = vmatmul.f32.gmra.mxu0 %v643
    %v662 = vpop.f32.mrf.mxu0
    %v663 = vadd.f32 0.0, %v662
    %664 = vdwg.mxu0
    %v666 = vsel %vm507, %v591, 0
    %668 = vmatpush.msra.mxu0 0.0
    %669 = vmatpush.msra.mxu0 0.0
    %670 = vmatpush.msra.mxu0 0.0
    %671 = vmatpush.msra.mxu0 0.0
    %672 = vmatpush.msra.mxu0 0.0
    %673 = vmatpush.msra.mxu0 0.0
    %674 = vmatpush.msra.mxu0 0.0
    %675 = vmatpush.msra.mxu0 0.0
    %676 = vmatpush.msra.mxu0 0.0
    %677 = vmatpush.msra.mxu0 0.0
    %678 = vmatpush.msra.mxu0 0.0
    %679 = vmatpush.msra.mxu0 0.0
    %680 = vmatpush.msra.mxu0 0.0
    %681 = vmatpush.msra.mxu0 0.0
    %682 = vmatpush.msra.mxu0 0.0
    %683 = vmatpush.msra.mxu0 %v278
    %684 = vmatmul.f32.gmra.mxu0 %v666
    %v685 = vpop.f32.mrf.mxu0
    %v686 = vadd.f32 0.0, %v685
    %687 = vdwg.mxu0
    %v689 = vsel %vm507, %v592, 0
    %691 = vmatpush.msra.mxu0 0.0
    %692 = vmatpush.msra.mxu0 0.0
    %693 = vmatpush.msra.mxu0 0.0
    %694 = vmatpush.msra.mxu0 0.0
    %695 = vmatpush.msra.mxu0 0.0
    %696 = vmatpush.msra.mxu0 0.0
    %697 = vmatpush.msra.mxu0 0.0
    %698 = vmatpush.msra.mxu0 0.0
    %699 = vmatpush.msra.mxu0 0.0
    %700 = vmatpush.msra.mxu0 0.0
    %701 = vmatpush.msra.mxu0 0.0
    %702 = vmatpush.msra.mxu0 0.0
    %703 = vmatpush.msra.mxu0 0.0
    %704 = vmatpush.msra.mxu0 0.0
    %705 = vmatpush.msra.mxu0 0.0
    %706 = vmatpush.msra.mxu0 %v254
    %707 = vmatmul.f32.gmra.mxu0 %v689
    %v708 = vpop.f32.mrf.mxu0
    %v709 = vadd.f32 0.0, %v708
    %710 = vdwg.mxu0
    %v712 = vsel %vm507, %v593, 0
    %714 = vmatpush.msra.mxu0 0.0
    %715 = vmatpush.msra.mxu0 0.0
    %716 = vmatpush.msra.mxu0 0.0
    %717 = vmatpush.msra.mxu0 0.0
    %718 = vmatpush.msra.mxu0 0.0
    %719 = vmatpush.msra.mxu0 0.0
    %720 = vmatpush.msra.mxu0 0.0
    %721 = vmatpush.msra.mxu0 0.0
    %722 = vmatpush.msra.mxu0 0.0
    %723 = vmatpush.msra.mxu0 0.0
    %724 = vmatpush.msra.mxu0 0.0
    %725 = vmatpush.msra.mxu0 0.0
    %726 = vmatpush.msra.mxu0 0.0
    %727 = vmatpush.msra.mxu0 0.0
    %728 = vmatpush.msra.mxu0 0.0
    %729 = vmatpush.msra.mxu0 %v282
    %730 = vmatmul.f32.gmra.mxu0 %v712
    %v731 = vpop.f32.mrf.mxu0
    %v732 = vadd.f32 0.0, %v731
    %733 = vdwg.mxu0
    %v735 = vsel %vm507, %v594, 0
    %737 = vmatpush.msra.mxu0 0.0
    %738 = vmatpush.msra.mxu0 0.0
    %739 = vmatpush.msra.mxu0 0.0
    %740 = vmatpush.msra.mxu0 0.0
    %741 = vmatpush.msra.mxu0 0.0
    %742 = vmatpush.msra.mxu0 0.0
    %743 = vmatpush.msra.mxu0 0.0
    %744 = vmatpush.msra.mxu0 0.0
    %745 = vmatpush.msra.mxu0 0.0
    %746 = vmatpush.msra.mxu0 0.0
    %747 = vmatpush.msra.mxu0 0.0
    %748 = vmatpush.msra.mxu0 0.0
    %749 = vmatpush.msra.mxu0 0.0
    %750 = vmatpush.msra.mxu0 0.0
    %751 = vmatpush.msra.mxu0 0.0
    %752 = vmatpush.msra.mxu0 %v285
    %753 = vmatmul.f32.gmra.mxu0 %v735
    %v754 = vpop.f32.mrf.mxu0
    %v755 = vadd.f32 0.0, %v754
    %756 = vdwg.mxu0
    %v758 = vsel %vm507, %v595, 0
    %760 = vmatpush.msra.mxu0 0.0
    %761 = vmatpush.msra.mxu0 0.0
    %762 = vmatpush.msra.mxu0 0.0
    %763 = vmatpush.msra.mxu0 0.0
    %764 = vmatpush.msra.mxu0 0.0
    %765 = vmatpush.msra.mxu0 0.0
    %766 = vmatpush.msra.mxu0 0.0
    %767 = vmatpush.msra.mxu0 0.0
    %768 = vmatpush.msra.mxu0 0.0
    %769 = vmatpush.msra.mxu0 0.0
    %770 = vmatpush.msra.mxu0 0.0
    %771 = vmatpush.msra.mxu0 0.0
    %772 = vmatpush.msra.mxu0 0.0
    %773 = vmatpush.msra.mxu0 0.0
    %774 = vmatpush.msra.mxu0 0.0
    %775 = vmatpush.msra.mxu0 %v288
    %776 = vmatmul.f32.gmra.mxu0 %v758
    %v777 = vpop.f32.mrf.mxu0
    %v778 = vadd.f32 0.0, %v777
    %779 = vdwg.mxu0
    %781 = vrot.lane.b32.xlu0 %v640, 16
    %v782 = vpop.permute.xlu0 %781
    %785 = vrot.lane.b32.xlu0 %v663, 32
    %v786 = vpop.permute.xlu0 %785
    %789 = vrot.lane.b32.xlu0 %v686, 48
    %v790 = vpop.permute.xlu0 %789
    %v792 = vsel %vm292, %v617, %v782
    %vm793 = vcmask 261120
    %v794 = vsel %vm793, %v792, %v786
    %vm795 = vcmask 392192
    %v796 = vsel %vm795, %v794, %v790
    %798 = vrot.lane.b32.xlu0 %v732, 16
    %v799 = vpop.permute.xlu0 %798
    %802 = vrot.lane.b32.xlu0 %v755, 32
    %v803 = vpop.permute.xlu0 %802
    %806 = vrot.lane.b32.xlu0 %v778, 48
    %v807 = vpop.permute.xlu0 %806
    %v809 = vsel %vm292, %v709, %v799
    %v810 = vsel %vm793, %v809, %v803
    %v811 = vsel %vm795, %v810, %v807
    %v812 = vpack.c.bf16 %v811, %v796
    %v813 = vld [vmem:[%s3] sm:$0xf]
    %v814 = vld [vmem:[%s3 + $0x4] sm:$0xf]
    %v815 = vld [vmem:[%s3 + $0x8] sm:$0xf]
    %v816 = vld [vmem:[%s3 + $0xc] sm:$0xf]
    %v817 = vld [vmem:[%s3 + $0x10] sm:$0xf]
    %v818 = vld [vmem:[%s3 + $0x14] sm:$0xf]
    %v819 = vld [vmem:[%s3 + $0x18] sm:$0xf]
    %v820 = vld [vmem:[%s3 + $0x1c] sm:$0xf]
    %v821 = vld [vmem:[#allocation7] sm:$0x1]
    %v823 = vperm.slane %v821, 0
    %v833 = vunpack.c.l.b16 %v813
    %v834 = vunpack.c.l.b16 %v814
    %v835 = vunpack.c.l.b16 %v815
    %v836 = vunpack.c.l.b16 %v816
    %v837 = vunpack.c.l.b16 %v817
    %v838 = vunpack.c.l.b16 %v818
    %v839 = vunpack.c.l.b16 %v819
    %v840 = vunpack.c.l.b16 %v820
    %v841 = vpack.c.b16 %v834, %v833
    %v842 = vpack.c.b16 %v836, %v835
    %v843 = vpack.c.b16 %v838, %v837
    %v844 = vpack.c.b16 %v840, %v839
    %v850 = vsel %vm224, %v812, 0
    %852 = vmatpush.bf16.msra.mxu0 0
    %853 = vmatpush.bf16.msra.mxu0 0
    %854 = vmatpush.bf16.msra.mxu0 0
    %855 = vmatpush.bf16.msra.mxu0 0
    %856 = vmatpush.bf16.msra.mxu0 %v844
    %857 = vmatpush.bf16.msra.mxu0 %v843
    %858 = vmatpush.bf16.msra.mxu0 %v842
    %859 = vmatpush.bf16.msra.mxu0 %v841
    %860 = vmatmul.bf16.gmra.mxu0 %v850
    %v861 = vpop.f32.mrf.mxu0
    %v862 = vadd.f32 %v823, %v861
    %v863 = vpop.f32.mrf.mxu0
    %v864 = vadd.f32 %v823, %v863
    %865 = vdwg.mxu0
    %v866 = vadd.f32 %v167, %v862
    %v867 = vadd.f32 %v168, %v864
    %v868 = vld [vmem:[#allocation8] sm:$0x1]
    %v869 = vld [vmem:[#allocation10] sm:$0x1]
    %v870 = vsel %vm224, %v866, 0.0
    %871 = vadd.xlane.f32.xlu0 %v870
    %v872 = vpop.xlane.xlu0 %871
    %v873 = vsel %vm224, %v867, 0.0
    %874 = vadd.xlane.f32.xlu0 %v873
    %v875 = vpop.xlane.xlu0 %874
    %v876 = vrcp.pop 64.0
    %v877 = vmul.f32 64.0, %v876
    %v878 = vsub.f32 1.0, %v877
    %v879 = vmul.f32 %v876, %v878
    %v880 = vadd.f32 %v876, %v879
    %vm881 = vweird.f32 %v876
    %v882 = vsel %vm881, %v876, %v880
    %v883 = vmul.f32 %v872, %v882
    %v884 = vmul.f32 %v875, %v882
    %v885 = vsub.f32 %v866, %v883
    %v886 = vsub.f32 %v867, %v884
    %v887 = vmul.f32 %v885, %v885
    %v888 = vmul.f32 %v886, %v886
    %v889 = vsel %vm224, %v887, 0.0
    %890 = vadd.xlane.f32.xlu0 %v889
    %v891 = vpop.xlane.xlu0 %890
    %v892 = vsel %vm224, %v888, 0.0
    %893 = vadd.xlane.f32.xlu0 %v892
    %v894 = vpop.xlane.xlu0 %893
    %v895 = vmul.f32 %v891, %v882
    %v896 = vmul.f32 %v894, %v882
    %v897 = vadd.f32 %v895, 1e-05
    %v898 = vadd.f32 %v896, 1e-05
    %v899 = vrsqrt.pop %v897
    %v900 = vmul.f32 %v899, %v897
    %v901 = vmul.f32 %v900, %v899
    %v902 = vmul.f32 0.5, %v901
    %v903 = vsub.f32 1.5, %v902
    %v904 = vmul.f32 %v899, %v903
    %vm905 = vweird.f32 %v897
    %vm906 = vweird.f32 %v899
    %vm907 = vmor %vm905, %vm906
    %v908 = vsel %vm907, %v899, %v904
    %v909 = vrsqrt.pop %v898
    %v910 = vmul.f32 %v909, %v898
    %v911 = vmul.f32 %v910, %v909
    %v912 = vmul.f32 0.5, %v911
    %v913 = vsub.f32 1.5, %v912
    %v914 = vmul.f32 %v909, %v913
    %vm915 = vweird.f32 %v898
    %vm916 = vweird.f32 %v909
    %vm917 = vmor %vm915, %vm916
    %v918 = vsel %vm917, %v909, %v914
    %v919 = vmul.f32 %v885, %v908
    %v920 = vmul.f32 %v886, %v918
    %v922 = vperm.slane %v868, 0
    %v924 = vmul.f32 %v919, %v922
    %v925 = vmul.f32 %v920, %v922
    %v927 = vperm.slane %v869, 0
    %v929 = vadd.f32 %v924, %v927
    %v930 = vadd.f32 %v925, %v927
    %v931 = vpack.c.bf16 %v930, %v929
    %v932 = vld [vmem:[%s7] sm:$0xff]
    %v933 = vld [vmem:[%s7 + $0x8] sm:$0xff]
    %v934 = vld [vmem:[%s7 + $0x10] sm:$0xff]
    %v935 = vld [vmem:[%s7 + $0x18] sm:$0xff]
    %v936 = vld [vmem:[%s7 + $0x20] sm:$0xff]
    %v937 = vld [vmem:[%s7 + $0x28] sm:$0xff]
    %v938 = vld [vmem:[%s7 + $0x30] sm:$0xff]
    %v939 = vld [vmem:[%s7 + $0x38] sm:$0xff]
    %v940 = vld [vmem:[%s8] sm:$0x3]
    %v942 = vperm.slane %v940, 0
    %v943 = vperm.slane %v940, 1
    %v954 = vunpack.c.l.b16 %v932
    %v955 = vunpack.c.h.b16 %v932
    %v956 = vunpack.c.l.b16 %v933
    %v957 = vunpack.c.h.b16 %v933
    %v958 = vunpack.c.l.b16 %v934
    %v959 = vunpack.c.h.b16 %v934
    %v960 = vunpack.c.l.b16 %v935
    %v961 = vunpack.c.h.b16 %v935
    %v962 = vunpack.c.l.b16 %v936
    %v963 = vunpack.c.h.b16 %v936
    %v964 = vunpack.c.l.b16 %v937
    %v965 = vunpack.c.h.b16 %v937
    %v966 = vunpack.c.l.b16 %v938
    %v967 = vunpack.c.h.b16 %v938
    %v968 = vunpack.c.l.b16 %v939
    %v969 = vunpack.c.h.b16 %v939
    %v970 = vpack.c.b16 %v956, %v954
    %v971 = vpack.c.b16 %v957, %v955
    %v972 = vpack.c.b16 %v960, %v958
    %v973 = vpack.c.b16 %v961, %v959
    %v974 = vpack.c.b16 %v964, %v962
    %v975 = vpack.c.b16 %v965, %v963
    %v976 = vpack.c.b16 %v968, %v966
    %v977 = vpack.c.b16 %v969, %v967
    %v987 = vsel %vm224, %v931, 0
    %989 = vmatpush.bf16.msra.mxu0 0
    %990 = vmatpush.bf16.msra.mxu0 0
    %991 = vmatpush.bf16.msra.mxu0 0
    %992 = vmatpush.bf16.msra.mxu0 0
    %993 = vmatpush.bf16.msra.mxu0 %v976
    %994 = vmatpush.bf16.msra.mxu0 %v974
    %995 = vmatpush.bf16.msra.mxu0 %v972
    %996 = vmatpush.bf16.msra.mxu0 %v970
    %997 = vmatmul.bf16.gmra.mxu0 %v987
    %v998 = vpop.f32.mrf.mxu0
    %v999 = vadd.f32 %v942, %v998
    %v1000 = vpop.f32.mrf.mxu0
    %v1001 = vadd.f32 %v942, %v1000
    %1002 = vdwg.mxu0
    %1003 = vmatpush.bf16.msra.mxu0 0
    %1004 = vmatpush.bf16.msra.mxu0 0
    %1005 = vmatpush.bf16.msra.mxu0 0
    %1006 = vmatpush.bf16.msra.mxu0 0
    %1007 = vmatpush.bf16.msra.mxu0 %v977
    %1008 = vmatpush.bf16.msra.mxu0 %v975
    %1009 = vmatpush.bf16.msra.mxu0 %v973
    %1010 = vmatpush.bf16.msra.mxu0 %v971
    %1011 = vmatmul.bf16.gmra.mxu0 %v987
    %v1012 = vpop.f32.mrf.mxu0
    %v1013 = vadd.f32 %v943, %v1012
    %v1014 = vpop.f32.mrf.mxu0
    %v1015 = vadd.f32 %v943, %v1014
    %1016 = vdwg.mxu0
    %v1017 = vmax.f32 %v999, 0.0
    %v1018 = vmax.f32 %v1013, 0.0
    %v1019 = vmax.f32 %v1001, 0.0
    %v1020 = vmax.f32 %v1015, 0.0
    %v1021 = vpack.c.bf16 %v1019, %v1017
    %v1022 = vpack.c.bf16 %v1020, %v1018
    %v1023 = vld [vmem:[%s9] sm:$0xf]
    %v1024 = vld [vmem:[%s9 + $0x4] sm:$0xf]
    %v1025 = vld [vmem:[%s9 + $0x8] sm:$0xf]
    %v1026 = vld [vmem:[%s9 + $0xc] sm:$0xf]
    %v1027 = vld [vmem:[%s9 + $0x10] sm:$0xf]
    %v1028 = vld [vmem:[%s9 + $0x14] sm:$0xf]
    %v1029 = vld [vmem:[%s9 + $0x18] sm:$0xf]
    %v1030 = vld [vmem:[%s9 + $0x1c] sm:$0xf]
    %v1031 = vld [vmem:[%s9 + $0x20] sm:$0xf]
    %v1032 = vld [vmem:[%s9 + $0x24] sm:$0xf]
    %v1033 = vld [vmem:[%s9 + $0x28] sm:$0xf]
    %v1034 = vld [vmem:[%s9 + $0x2c] sm:$0xf]
    %v1035 = vld [vmem:[%s9 + $0x30] sm:$0xf]
    %v1036 = vld [vmem:[%s9 + $0x34] sm:$0xf]
    %v1037 = vld [vmem:[%s9 + $0x38] sm:$0xf]
    %v1038 = vld [vmem:[%s9 + $0x3c] sm:$0xf]
    %v1039 = vld [vmem:[%s9 + $0x40] sm:$0xf]
    %v1040 = vld [vmem:[%s9 + $0x44] sm:$0xf]
    %v1041 = vld [vmem:[%s9 + $0x48] sm:$0xf]
    %v1042 = vld [vmem:[%s9 + $0x4c] sm:$0xf]
    %v1043 = vld [vmem:[%s9 + $0x50] sm:$0xf]
    %v1044 = vld [vmem:[%s9 + $0x54] sm:$0xf]
    %v1045 = vld [vmem:[%s9 + $0x58] sm:$0xf]
    %v1046 = vld [vmem:[%s9 + $0x5c] sm:$0xf]
    %v1047 = vld [vmem:[%s9 + $0x60] sm:$0xf]
    %v1048 = vld [vmem:[%s9 + $0x64] sm:$0xf]
    %v1049 = vld [vmem:[%s9 + $0x68] sm:$0xf]
    %v1050 = vld [vmem:[%s9 + $0x6c] sm:$0xf]
    %v1051 = vld [vmem:[%s9 + $0x70] sm:$0xf]
    %v1052 = vld [vmem:[%s9 + $0x74] sm:$0xf]
    %v1053 = vld [vmem:[%s9 + $0x78] sm:$0xf]
    %v1054 = vld [vmem:[%s9 + $0x7c] sm:$0xf]
    %v1055 = vld [vmem:[%s10] sm:$0x1]
    %v1057 = vperm.slane %v1055, 0
    %v1091 = vunpack.c.l.b16 %v1023
    %v1092 = vunpack.c.l.b16 %v1024
    %v1093 = vunpack.c.l.b16 %v1025
    %v1094 = vunpack.c.l.b16 %v1026
    %v1095 = vunpack.c.l.b16 %v1027
    %v1096 = vunpack.c.l.b16 %v1028
    %v1097 = vunpack.c.l.b16 %v1029
    %v1098 = vunpack.c.l.b16 %v1030
    %v1099 = vunpack.c.l.b16 %v1031
    %v1100 = vunpack.c.l.b16 %v1032
    %v1101 = vunpack.c.l.b16 %v1033
    %v1102 = vunpack.c.l.b16 %v1034
    %v1103 = vunpack.c.l.b16 %v1035
    %v1104 = vunpack.c.l.b16 %v1036
    %v1105 = vunpack.c.l.b16 %v1037
    %v1106 = vunpack.c.l.b16 %v1038
    %v1107 = vunpack.c.l.b16 %v1039
    %v1108 = vunpack.c.l.b16 %v1040
    %v1109 = vunpack.c.l.b16 %v1041
    %v1110 = vunpack.c.l.b16 %v1042
    %v1111 = vunpack.c.l.b16 %v1043
    %v1112 = vunpack.c.l.b16 %v1044
    %v1113 = vunpack.c.l.b16 %v1045
    %v1114 = vunpack.c.l.b16 %v1046
    %v1115 = vunpack.c.l.b16 %v1047
    %v1116 = vunpack.c.l.b16 %v1048
    %v1117 = vunpack.c.l.b16 %v1049
    %v1118 = vunpack.c.l.b16 %v1050
    %v1119 = vunpack.c.l.b16 %v1051
    %v1120 = vunpack.c.l.b16 %v1052
    %v1121 = vunpack.c.l.b16 %v1053
    %v1122 = vunpack.c.l.b16 %v1054
    %v1123 = vpack.c.b16 %v1092, %v1091
    %v1124 = vpack.c.b16 %v1094, %v1093
    %v1125 = vpack.c.b16 %v1096, %v1095
    %v1126 = vpack.c.b16 %v1098, %v1097
    %v1127 = vpack.c.b16 %v1100, %v1099
    %v1128 = vpack.c.b16 %v1102, %v1101
    %v1129 = vpack.c.b16 %v1104, %v1103
    %v1130 = vpack.c.b16 %v1106, %v1105
    %v1131 = vpack.c.b16 %v1108, %v1107
    %v1132 = vpack.c.b16 %v1110, %v1109
    %v1133 = vpack.c.b16 %v1112, %v1111
    %v1134 = vpack.c.b16 %v1114, %v1113
    %v1135 = vpack.c.b16 %v1116, %v1115
    %v1136 = vpack.c.b16 %v1118, %v1117
    %v1137 = vpack.c.b16 %v1120, %v1119
    %v1138 = vpack.c.b16 %v1122, %v1121
    %1155 = vmatpush.bf16.msra.mxu0 %v1130
    %1156 = vmatpush.bf16.msra.mxu0 %v1129
    %1157 = vmatpush.bf16.msra.mxu0 %v1128
    %1158 = vmatpush.bf16.msra.mxu0 %v1127
    %1159 = vmatpush.bf16.msra.mxu0 %v1126
    %1160 = vmatpush.bf16.msra.mxu0 %v1125
    %1161 = vmatpush.bf16.msra.mxu0 %v1124
    %1162 = vmatpush.bf16.msra.mxu0 %v1123
    %1163 = vmatmul.bf16.gmra.mxu0 %v1021
    %v1164 = vpop.f32.mrf.mxu0
    %v1165 = vadd.f32 %v1057, %v1164
    %v1166 = vpop.f32.mrf.mxu0
    %v1167 = vadd.f32 %v1057, %v1166
    %1168 = vdwg.mxu0
    %1169 = vmatpush.bf16.msra.mxu0 %v1138
    %1170 = vmatpush.bf16.msra.mxu0 %v1137
    %1171 = vmatpush.bf16.msra.mxu0 %v1136
    %1172 = vmatpush.bf16.msra.mxu0 %v1135
    %1173 = vmatpush.bf16.msra.mxu0 %v1134
    %1174 = vmatpush.bf16.msra.mxu0 %v1133
    %1175 = vmatpush.bf16.msra.mxu0 %v1132
    %1176 = vmatpush.bf16.msra.mxu0 %v1131
    %1177 = vmatmul.bf16.gmra.mxu0 %v1022
    %v1178 = vpop.f32.mrf.mxu0
    %v1179 = vadd.f32 %v1165, %v1178
    %v1180 = vpop.f32.mrf.mxu0
    %v1181 = vadd.f32 %v1167, %v1180
    %1182 = vdwg.mxu0
    %v1183 = vadd.f32 %v929, %v1179
    %v1184 = vadd.f32 %v930, %v1181
    %v1185 = vld [vmem:[%s11] sm:$0x1]
    %v1186 = vld [vmem:[#allocation11] sm:$0x1]
    %v1187 = vsel %vm224, %v1183, 0.0
    %1188 = vadd.xlane.f32.xlu0 %v1187
    %v1189 = vpop.xlane.xlu0 %1188
    %v1190 = vsel %vm224, %v1184, 0.0
    %1191 = vadd.xlane.f32.xlu0 %v1190
    %v1192 = vpop.xlane.xlu0 %1191
    %v1193 = vmul.f32 %v1189, %v882
    %v1194 = vmul.f32 %v1192, %v882
    %v1195 = vsub.f32 %v1183, %v1193
    %v1196 = vsub.f32 %v1184, %v1194
    %v1197 = vmul.f32 %v1195, %v1195
    %v1198 = vmul.f32 %v1196, %v1196
    %v1199 = vsel %vm224, %v1197, 0.0
    %1200 = vadd.xlane.f32.xlu0 %v1199
    %v1201 = vpop.xlane.xlu0 %1200
    %v1202 = vsel %vm224, %v1198, 0.0
    %1203 = vadd.xlane.f32.xlu0 %v1202
    %v1204 = vpop.xlane.xlu0 %1203
    %v1205 = vmul.f32 %v1201, %v882
    %v1206 = vmul.f32 %v1204, %v882
    %v1207 = vadd.f32 %v1205, 1e-05
    %v1208 = vadd.f32 %v1206, 1e-05
    %v1209 = vrsqrt.pop %v1207
    %v1210 = vmul.f32 %v1209, %v1207
    %v1211 = vmul.f32 %v1210, %v1209
    %v1212 = vmul.f32 0.5, %v1211
    %v1213 = vsub.f32 1.5, %v1212
    %v1214 = vmul.f32 %v1209, %v1213
    %vm1215 = vweird.f32 %v1207
    %vm1216 = vweird.f32 %v1209
    %vm1217 = vmor %vm1215, %vm1216
    %v1218 = vsel %vm1217, %v1209, %v1214
    %v1219 = vrsqrt.pop %v1208
    %v1220 = vmul.f32 %v1219, %v1208
    %v1221 = vmul.f32 %v1220, %v1219
    %v1222 = vmul.f32 0.5, %v1221
    %v1223 = vsub.f32 1.5, %v1222
    %v1224 = vmul.f32 %v1219, %v1223
    %vm1225 = vweird.f32 %v1208
    %vm1226 = vweird.f32 %v1219
    %vm1227 = vmor %vm1225, %vm1226
    %v1228 = vsel %vm1227, %v1219, %v1224
    %v1229 = vmul.f32 %v1195, %v1218
    %v1230 = vmul.f32 %v1196, %v1228
    %v1232 = vperm.slane %v1185, 0
    %v1234 = vmul.f32 %v1229, %v1232
    %v1235 = vmul.f32 %v1230, %v1232
    %v1237 = vperm.slane %v1186, 0
    %v1239 = vadd.f32 %v1234, %v1237
    %v1240 = vadd.f32 %v1235, %v1237
    %v1241 = vpack.c.bf16 %v1240, %v1239
    %s1242 = scalar_lea.vmem %s1, 64
    %v1243 = vld [vmem:[%s1242] sm:$0xff]
    %v1244 = vld [vmem:[%s1242 + $0x8] sm:$0xff]
    %v1245 = vld [vmem:[%s1242 + $0x10] sm:$0xff]
    %v1246 = vld [vmem:[%s1242 + $0x18] sm:$0xff]
    %v1247 = vld [vmem:[%s1242 + $0x20] sm:$0xff]
    %v1248 = vld [vmem:[%s1242 + $0x28] sm:$0xff]
    %v1249 = vld [vmem:[%s1242 + $0x30] sm:$0xff]
    %v1250 = vld [vmem:[%s1242 + $0x38] sm:$0xff]
    %s1251 = scalar_lea.vmem [#allocation5], 2
    %v1252 = vld [vmem:[%s1251] sm:$0x3]
    %v1254 = vperm.slane %v1252, 0
    %v1255 = vperm.slane %v1252, 1
    %v1266 = vunpack.c.l.b16 %v1243
    %v1267 = vunpack.c.h.b16 %v1243
    %v1268 = vunpack.c.l.b16 %v1244
    %v1269 = vunpack.c.h.b16 %v1244
    %v1270 = vunpack.c.l.b16 %v1245
    %v1271 = vunpack.c.h.b16 %v1245
    %v1272 = vunpack.c.l.b16 %v1246
    %v1273 = vunpack.c.h.b16 %v1246
    %v1274 = vunpack.c.l.b16 %v1247
    %v1275 = vunpack.c.h.b16 %v1247
    %v1276 = vunpack.c.l.b16 %v1248
    %v1277 = vunpack.c.h.b16 %v1248
    %v1278 = vunpack.c.l.b16 %v1249
    %v1279 = vunpack.c.h.b16 %v1249
    %v1280 = vunpack.c.l.b16 %v1250
    %v1281 = vunpack.c.h.b16 %v1250
    %v1282 = vpack.c.b16 %v1268, %v1266
    %v1283 = vpack.c.b16 %v1269, %v1267
    %v1284 = vpack.c.b16 %v1272, %v1270
    %v1285 = vpack.c.b16 %v1273, %v1271
    %v1286 = vpack.c.b16 %v1276, %v1274
    %v1287 = vpack.c.b16 %v1277, %v1275
    %v1288 = vpack.c.b16 %v1280, %v1278
    %v1289 = vpack.c.b16 %v1281, %v1279
    %v1299 = vsel %vm224, %v1241, 0
    %1301 = vmatpush.bf16.msra.mxu0 0
    %1302 = vmatpush.bf16.msra.mxu0 0
    %1303 = vmatpush.bf16.msra.mxu0 0
    %1304 = vmatpush.bf16.msra.mxu0 0
    %1305 = vmatpush.bf16.msra.mxu0 %v1288
    %1306 = vmatpush.bf16.msra.mxu0 %v1286
    %1307 = vmatpush.bf16.msra.mxu0 %v1284
    %1308 = vmatpush.bf16.msra.mxu0 %v1282
    %1309 = vmatmul.bf16.gmra.mxu0 %v1299
    %v1310 = vpop.f32.mrf.mxu0
    %v1311 = vadd.f32 %v1254, %v1310
    %v1312 = vpop.f32.mrf.mxu0
    %v1313 = vadd.f32 %v1254, %v1312
    %1314 = vdwg.mxu0
    %1315 = vmatpush.bf16.msra.mxu0 0
    %1316 = vmatpush.bf16.msra.mxu0 0
    %1317 = vmatpush.bf16.msra.mxu0 0
    %1318 = vmatpush.bf16.msra.mxu0 0
    %1319 = vmatpush.bf16.msra.mxu0 %v1289
    %1320 = vmatpush.bf16.msra.mxu0 %v1287
    %1321 = vmatpush.bf16.msra.mxu0 %v1285
    %1322 = vmatpush.bf16.msra.mxu0 %v1283
    %1323 = vmatmul.bf16.gmra.mxu0 %v1299
    %v1324 = vpop.f32.mrf.mxu0
    %v1325 = vadd.f32 %v1255, %v1324
    %v1326 = vpop.f32.mrf.mxu0
    %v1327 = vadd.f32 %v1255, %v1326
    %1328 = vdwg.mxu0
    %1330 = vrot.lane.b32.xlu0 %v1311, 112
    %v1331 = vpop.permute.xlu0 %1330
    %1332 = vrot.lane.b32.xlu0 %v1311, 96
    %v1333 = vpop.permute.xlu0 %1332
    %1334 = vrot.lane.b32.xlu0 %v1311, 80
    %v1335 = vpop.permute.xlu0 %1334
    %1337 = vrot.lane.b32.xlu0 %v1313, 112
    %v1338 = vpop.permute.xlu0 %1337
    %1339 = vrot.lane.b32.xlu0 %v1313, 96
    %v1340 = vpop.permute.xlu0 %1339
    %1341 = vrot.lane.b32.xlu0 %v1313, 80
    %v1342 = vpop.permute.xlu0 %1341
    %1344 = vrot.lane.b32.xlu0 %v1325, 112
    %v1345 = vpop.permute.xlu0 %1344
    %1347 = vrot.lane.b32.xlu0 %v1325, 96
    %v1348 = vpop.permute.xlu0 %1347
    %1350 = vrot.lane.b32.xlu0 %v1325, 80
    %v1351 = vpop.permute.xlu0 %1350
    %1354 = vrot.lane.b32.xlu0 %v1327, 112
    %v1355 = vpop.permute.xlu0 %1354
    %1357 = vrot.lane.b32.xlu0 %v1327, 96
    %v1358 = vpop.permute.xlu0 %1357
    %1360 = vrot.lane.b32.xlu0 %v1327, 80
    %v1361 = vpop.permute.xlu0 %1360
    %1363 = vrot.lane.b32.xlu0 %v1311, 64
    %v1364 = vpop.permute.xlu0 %1363
    %v1365 = vsel %vm292, %v1311, 0
    %v1367 = vsel %vm292, %v1364, 0
    %1369 = vmatpush.xpose.msra.mxu0 0.0
    %1370 = vmatpush.xpose.msra.mxu0 0.0
    %1371 = vmatpush.xpose.msra.mxu0 0.0
    %1372 = vmatpush.xpose.msra.mxu0 0.0
    %1373 = vmatpush.xpose.msra.mxu0 0.0
    %1374 = vmatpush.xpose.msra.mxu0 0.0
    %1375 = vmatpush.xpose.msra.mxu0 0.0
    %1376 = vmatpush.xpose.msra.mxu0 0.0
    %1377 = vmatpush.xpose.msra.mxu0 0.0
    %1378 = vmatpush.xpose.msra.mxu0 0.0
    %1379 = vmatpush.xpose.msra.mxu0 0.0
    %1380 = vmatpush.xpose.msra.mxu0 0.0
    %1381 = vmatpush.xpose.msra.mxu0 0.0
    %1382 = vmatpush.xpose.msra.mxu0 0.0
    %1383 = vmatpush.xpose.msra.mxu0 0.0
    %1384 = vmatpush.xpose.msra.mxu0 %v1367
    %1385 = vmatmul.f32.gmra.mxu0 %v1365
    %v1386 = vpop.f32.mrf.mxu0
    %v1387 = vadd.f32 0.0, %v1386
    %1388 = vdwg.mxu0
    %1389 = vrot.lane.b32.xlu0 %v1331, 64
    %v1390 = vpop.permute.xlu0 %1389
    %v1391 = vsel %vm292, %v1331, 0
    %v1393 = vsel %vm292, %v1390, 0
    %1395 = vmatpush.xpose.msra.mxu0 0.0
    %1396 = vmatpush.xpose.msra.mxu0 0.0
    %1397 = vmatpush.xpose.msra.mxu0 0.0
    %1398 = vmatpush.xpose.msra.mxu0 0.0
    %1399 = vmatpush.xpose.msra.mxu0 0.0
    %1400 = vmatpush.xpose.msra.mxu0 0.0
    %1401 = vmatpush.xpose.msra.mxu0 0.0
    %1402 = vmatpush.xpose.msra.mxu0 0.0
    %1403 = vmatpush.xpose.msra.mxu0 0.0
    %1404 = vmatpush.xpose.msra.mxu0 0.0
    %1405 = vmatpush.xpose.msra.mxu0 0.0
    %1406 = vmatpush.xpose.msra.mxu0 0.0
    %1407 = vmatpush.xpose.msra.mxu0 0.0
    %1408 = vmatpush.xpose.msra.mxu0 0.0
    %1409 = vmatpush.xpose.msra.mxu0 0.0
    %1410 = vmatpush.xpose.msra.mxu0 %v1393
    %1411 = vmatmul.f32.gmra.mxu0 %v1391
    %v1412 = vpop.f32.mrf.mxu0
    %v1413 = vadd.f32 0.0, %v1412
    %1414 = vdwg.mxu0
    %1415 = vrot.lane.b32.xlu0 %v1333, 64
    %v1416 = vpop.permute.xlu0 %1415
    %v1417 = vsel %vm292, %v1333, 0
    %v1419 = vsel %vm292, %v1416, 0
    %1421 = vmatpush.xpose.msra.mxu0 0.0
    %1422 = vmatpush.xpose.msra.mxu0 0.0
    %1423 = vmatpush.xpose.msra.mxu0 0.0
    %1424 = vmatpush.xpose.msra.mxu0 0.0
    %1425 = vmatpush.xpose.msra.mxu0 0.0
    %1426 = vmatpush.xpose.msra.mxu0 0.0
    %1427 = vmatpush.xpose.msra.mxu0 0.0
    %1428 = vmatpush.xpose.msra.mxu0 0.0
    %1429 = vmatpush.xpose.msra.mxu0 0.0
    %1430 = vmatpush.xpose.msra.mxu0 0.0
    %1431 = vmatpush.xpose.msra.mxu0 0.0
    %1432 = vmatpush.xpose.msra.mxu0 0.0
    %1433 = vmatpush.xpose.msra.mxu0 0.0
    %1434 = vmatpush.xpose.msra.mxu0 0.0
    %1435 = vmatpush.xpose.msra.mxu0 0.0
    %1436 = vmatpush.xpose.msra.mxu0 %v1419
    %1437 = vmatmul.f32.gmra.mxu0 %v1417
    %v1438 = vpop.f32.mrf.mxu0
    %v1439 = vadd.f32 0.0, %v1438
    %1440 = vdwg.mxu0
    %1441 = vrot.lane.b32.xlu0 %v1335, 64
    %v1442 = vpop.permute.xlu0 %1441
    %v1443 = vsel %vm292, %v1335, 0
    %v1445 = vsel %vm292, %v1442, 0
    %1447 = vmatpush.xpose.msra.mxu0 0.0
    %1448 = vmatpush.xpose.msra.mxu0 0.0
    %1449 = vmatpush.xpose.msra.mxu0 0.0
    %1450 = vmatpush.xpose.msra.mxu0 0.0
    %1451 = vmatpush.xpose.msra.mxu0 0.0
    %1452 = vmatpush.xpose.msra.mxu0 0.0
    %1453 = vmatpush.xpose.msra.mxu0 0.0
    %1454 = vmatpush.xpose.msra.mxu0 0.0
    %1455 = vmatpush.xpose.msra.mxu0 0.0
    %1456 = vmatpush.xpose.msra.mxu0 0.0
    %1457 = vmatpush.xpose.msra.mxu0 0.0
    %1458 = vmatpush.xpose.msra.mxu0 0.0
    %1459 = vmatpush.xpose.msra.mxu0 0.0
    %1460 = vmatpush.xpose.msra.mxu0 0.0
    %1461 = vmatpush.xpose.msra.mxu0 0.0
    %1462 = vmatpush.xpose.msra.mxu0 %v1445
    %1463 = vmatmul.f32.gmra.mxu0 %v1443
    %v1464 = vpop.f32.mrf.mxu0
    %v1465 = vadd.f32 0.0, %v1464
    %1466 = vdwg.mxu0
    %1467 = vrot.lane.b32.xlu0 %v1313, 64
    %v1468 = vpop.permute.xlu0 %1467
    %v1469 = vsel %vm292, %v1313, 0
    %v1471 = vsel %vm292, %v1468, 0
    %1473 = vmatpush.xpose.msra.mxu0 0.0
    %1474 = vmatpush.xpose.msra.mxu0 0.0
    %1475 = vmatpush.xpose.msra.mxu0 0.0
    %1476 = vmatpush.xpose.msra.mxu0 0.0
    %1477 = vmatpush.xpose.msra.mxu0 0.0
    %1478 = vmatpush.xpose.msra.mxu0 0.0
    %1479 = vmatpush.xpose.msra.mxu0 0.0
    %1480 = vmatpush.xpose.msra.mxu0 0.0
    %1481 = vmatpush.xpose.msra.mxu0 0.0
    %1482 = vmatpush.xpose.msra.mxu0 0.0
    %1483 = vmatpush.xpose.msra.mxu0 0.0
    %1484 = vmatpush.xpose.msra.mxu0 0.0
    %1485 = vmatpush.xpose.msra.mxu0 0.0
    %1486 = vmatpush.xpose.msra.mxu0 0.0
    %1487 = vmatpush.xpose.msra.mxu0 0.0
    %1488 = vmatpush.xpose.msra.mxu0 %v1471
    %1489 = vmatmul.f32.gmra.mxu0 %v1469
    %v1490 = vpop.f32.mrf.mxu0
    %v1491 = vadd.f32 0.0, %v1490
    %1492 = vdwg.mxu0
    %1493 = vrot.lane.b32.xlu0 %v1338, 64
    %v1494 = vpop.permute.xlu0 %1493
    %v1495 = vsel %vm292, %v1338, 0
    %v1497 = vsel %vm292, %v1494, 0
    %1499 = vmatpush.xpose.msra.mxu0 0.0
    %1500 = vmatpush.xpose.msra.mxu0 0.0
    %1501 = vmatpush.xpose.msra.mxu0 0.0
    %1502 = vmatpush.xpose.msra.mxu0 0.0
    %1503 = vmatpush.xpose.msra.mxu0 0.0
    %1504 = vmatpush.xpose.msra.mxu0 0.0
    %1505 = vmatpush.xpose.msra.mxu0 0.0
    %1506 = vmatpush.xpose.msra.mxu0 0.0
    %1507 = vmatpush.xpose.msra.mxu0 0.0
    %1508 = vmatpush.xpose.msra.mxu0 0.0
    %1509 = vmatpush.xpose.msra.mxu0 0.0
    %1510 = vmatpush.xpose.msra.mxu0 0.0
    %1511 = vmatpush.xpose.msra.mxu0 0.0
    %1512 = vmatpush.xpose.msra.mxu0 0.0
    %1513 = vmatpush.xpose.msra.mxu0 0.0
    %1514 = vmatpush.xpose.msra.mxu0 %v1497
    %1515 = vmatmul.f32.gmra.mxu0 %v1495
    %v1516 = vpop.f32.mrf.mxu0
    %v1517 = vadd.f32 0.0, %v1516
    %1518 = vdwg.mxu0
    %1519 = vrot.lane.b32.xlu0 %v1340, 64
    %v1520 = vpop.permute.xlu0 %1519
    %v1521 = vsel %vm292, %v1340, 0
    %v1523 = vsel %vm292, %v1520, 0
    %1525 = vmatpush.xpose.msra.mxu0 0.0
    %1526 = vmatpush.xpose.msra.mxu0 0.0
    %1527 = vmatpush.xpose.msra.mxu0 0.0
    %1528 = vmatpush.xpose.msra.mxu0 0.0
    %1529 = vmatpush.xpose.msra.mxu0 0.0
    %1530 = vmatpush.xpose.msra.mxu0 0.0
    %1531 = vmatpush.xpose.msra.mxu0 0.0
    %1532 = vmatpush.xpose.msra.mxu0 0.0
    %1533 = vmatpush.xpose.msra.mxu0 0.0
    %1534 = vmatpush.xpose.msra.mxu0 0.0
    %1535 = vmatpush.xpose.msra.mxu0 0.0
    %1536 = vmatpush.xpose.msra.mxu0 0.0
    %1537 = vmatpush.xpose.msra.mxu0 0.0
    %1538 = vmatpush.xpose.msra.mxu0 0.0
    %1539 = vmatpush.xpose.msra.mxu0 0.0
    %1540 = vmatpush.xpose.msra.mxu0 %v1523
    %1541 = vmatmul.f32.gmra.mxu0 %v1521
    %v1542 = vpop.f32.mrf.mxu0
    %v1543 = vadd.f32 0.0, %v1542
    %1544 = vdwg.mxu0
    %1545 = vrot.lane.b32.xlu0 %v1342, 64
    %v1546 = vpop.permute.xlu0 %1545
    %v1547 = vsel %vm292, %v1342, 0
    %v1549 = vsel %vm292, %v1546, 0
    %1551 = vmatpush.xpose.msra.mxu0 0.0
    %1552 = vmatpush.xpose.msra.mxu0 0.0
    %1553 = vmatpush.xpose.msra.mxu0 0.0
    %1554 = vmatpush.xpose.msra.mxu0 0.0
    %1555 = vmatpush.xpose.msra.mxu0 0.0
    %1556 = vmatpush.xpose.msra.mxu0 0.0
    %1557 = vmatpush.xpose.msra.mxu0 0.0
    %1558 = vmatpush.xpose.msra.mxu0 0.0
    %1559 = vmatpush.xpose.msra.mxu0 0.0
    %1560 = vmatpush.xpose.msra.mxu0 0.0
    %1561 = vmatpush.xpose.msra.mxu0 0.0
    %1562 = vmatpush.xpose.msra.mxu0 0.0
    %1563 = vmatpush.xpose.msra.mxu0 0.0
    %1564 = vmatpush.xpose.msra.mxu0 0.0
    %1565 = vmatpush.xpose.msra.mxu0 0.0
    %1566 = vmatpush.xpose.msra.mxu0 %v1549
    %1567 = vmatmul.f32.gmra.mxu0 %v1547
    %v1568 = vpop.f32.mrf.mxu0
    %v1569 = vadd.f32 0.0, %v1568
    %1570 = vdwg.mxu0
    %v1571 = vmul.f32 %v1387, 0.25
    %v1572 = vmul.f32 %v1413, 0.25
    %v1573 = vmul.f32 %v1439, 0.25
    %v1574 = vmul.f32 %v1465, 0.25
    %v1575 = vmul.f32 %v1491, 0.25
    %v1576 = vmul.f32 %v1517, 0.25
    %v1577 = vmul.f32 %v1543, 0.25
    %v1578 = vmul.f32 %v1569, 0.25
    %v1579 = vsel %vm507, %v1571, -inf
    %1580 = vmax.xlane.f32.xlu0 %v1579
    %v1581 = vpop.xlane.xlu0 %1580
    %v1582 = vsel %vm507, %v1572, -inf
    %1583 = vmax.xlane.f32.xlu0 %v1582
    %v1584 = vpop.xlane.xlu0 %1583
    %v1585 = vsel %vm507, %v1573, -inf
    %1586 = vmax.xlane.f32.xlu0 %v1585
    %v1587 = vpop.xlane.xlu0 %1586
    %v1588 = vsel %vm507, %v1574, -inf
    %1589 = vmax.xlane.f32.xlu0 %v1588
    %v1590 = vpop.xlane.xlu0 %1589
    %v1591 = vsel %vm507, %v1575, -inf
    %1592 = vmax.xlane.f32.xlu0 %v1591
    %v1593 = vpop.xlane.xlu0 %1592
    %v1594 = vsel %vm507, %v1576, -inf
    %1595 = vmax.xlane.f32.xlu0 %v1594
    %v1596 = vpop.xlane.xlu0 %1595
    %v1597 = vsel %vm507, %v1577, -inf
    %1598 = vmax.xlane.f32.xlu0 %v1597
    %v1599 = vpop.xlane.xlu0 %1598
    %v1600 = vsel %vm507, %v1578, -inf
    %1601 = vmax.xlane.f32.xlu0 %v1600
    %v1602 = vpop.xlane.xlu0 %1601
    %v1603 = vsub.f32 %v1571, %v1581
    %v1604 = vsub.f32 %v1572, %v1584
    %v1605 = vsub.f32 %v1573, %v1587
    %v1606 = vsub.f32 %v1574, %v1590
    %v1607 = vsub.f32 %v1575, %v1593
    %v1608 = vsub.f32 %v1576, %v1596
    %v1609 = vsub.f32 %v1577, %v1599
    %v1610 = vsub.f32 %v1578, %v1602
    %v1611 = vmul.f32 %v1603, 1.442695
    %v1612 = vpow.pop %v1611
    %v1613 = vmul.f32 %v1604, 1.442695
    %v1614 = vpow.pop %v1613
    %v1615 = vmul.f32 %v1605, 1.442695
    %v1616 = vpow.pop %v1615
    %v1617 = vmul.f32 %v1606, 1.442695
    %v1618 = vpow.pop %v1617
    %v1619 = vmul.f32 %v1607, 1.442695
    %v1620 = vpow.pop %v1619
    %v1621 = vmul.f32 %v1608, 1.442695
    %v1622 = vpow.pop %v1621
    %v1623 = vmul.f32 %v1609, 1.442695
    %v1624 = vpow.pop %v1623
    %v1625 = vmul.f32 %v1610, 1.442695
    %v1626 = vpow.pop %v1625
    %v1627 = vsel %vm507, %v1612, 0.0
    %1628 = vadd.xlane.f32.xlu0 %v1627
    %v1629 = vpop.xlane.xlu0 %1628
    %v1630 = vsel %vm507, %v1614, 0.0
    %1631 = vadd.xlane.f32.xlu0 %v1630
    %v1632 = vpop.xlane.xlu0 %1631
    %v1633 = vsel %vm507, %v1616, 0.0
    %1634 = vadd.xlane.f32.xlu0 %v1633
    %v1635 = vpop.xlane.xlu0 %1634
    %v1636 = vsel %vm507, %v1618, 0.0
    %1637 = vadd.xlane.f32.xlu0 %v1636
    %v1638 = vpop.xlane.xlu0 %1637
    %v1639 = vsel %vm507, %v1620, 0.0
    %1640 = vadd.xlane.f32.xlu0 %v1639
    %v1641 = vpop.xlane.xlu0 %1640
    %v1642 = vsel %vm507, %v1622, 0.0
    %1643 = vadd.xlane.f32.xlu0 %v1642
    %v1644 = vpop.xlane.xlu0 %1643
    %v1645 = vsel %vm507, %v1624, 0.0
    %1646 = vadd.xlane.f32.xlu0 %v1645
    %v1647 = vpop.xlane.xlu0 %1646
    %v1648 = vsel %vm507, %v1626, 0.0
    %1649 = vadd.xlane.f32.xlu0 %v1648
    %v1650 = vpop.xlane.xlu0 %1649
    %v1651 = vrcp.pop %v1629
    %v1652 = vrcp.pop %v1632
    %v1653 = vrcp.pop %v1635
    %v1654 = vrcp.pop %v1638
    %v1655 = vrcp.pop %v1641
    %v1656 = vrcp.pop %v1644
    %v1657 = vrcp.pop %v1647
    %v1658 = vrcp.pop %v1650
    %v1659 = vmul.f32 %v1612, %v1651
    %v1660 = vmul.f32 %v1614, %v1652
    %v1661 = vmul.f32 %v1616, %v1653
    %v1662 = vmul.f32 %v1618, %v1654
    %v1663 = vmul.f32 %v1620, %v1655
    %v1664 = vmul.f32 %v1622, %v1656
    %v1665 = vmul.f32 %v1624, %v1657
    %v1666 = vmul.f32 %v1626, %v1658
    %v1668 = vsel %vm507, %v1659, 0
    %1670 = vmatpush.msra.mxu0 0.0
    %1671 = vmatpush.msra.mxu0 0.0
    %1672 = vmatpush.msra.mxu0 0.0
    %1673 = vmatpush.msra.mxu0 0.0
    %1674 = vmatpush.msra.mxu0 0.0
    %1675 = vmatpush.msra.mxu0 0.0
    %1676 = vmatpush.msra.mxu0 0.0
    %1677 = vmatpush.msra.mxu0 0.0
    %1678 = vmatpush.msra.mxu0 0.0
    %1679 = vmatpush.msra.mxu0 0.0
    %1680 = vmatpush.msra.mxu0 0.0
    %1681 = vmatpush.msra.mxu0 0.0
    %1682 = vmatpush.msra.mxu0 0.0
    %1683 = vmatpush.msra.mxu0 0.0
    %1684 = vmatpush.msra.mxu0 0.0
    %1685 = vmatpush.msra.mxu0 %v1325
    %1686 = vmatmul.f32.gmra.mxu0 %v1668
    %v1687 = vpop.f32.mrf.mxu0
    %v1688 = vadd.f32 0.0, %v1687
    %1689 = vdwg.mxu0
    %v1691 = vsel %vm507, %v1660, 0
    %1693 = vmatpush.msra.mxu0 0.0
    %1694 = vmatpush.msra.mxu0 0.0
    %1695 = vmatpush.msra.mxu0 0.0
    %1696 = vmatpush.msra.mxu0 0.0
    %1697 = vmatpush.msra.mxu0 0.0
    %1698 = vmatpush.msra.mxu0 0.0
    %1699 = vmatpush.msra.mxu0 0.0
    %1700 = vmatpush.msra.mxu0 0.0
    %1701 = vmatpush.msra.mxu0 0.0
    %1702 = vmatpush.msra.mxu0 0.0
    %1703 = vmatpush.msra.mxu0 0.0
    %1704 = vmatpush.msra.mxu0 0.0
    %1705 = vmatpush.msra.mxu0 0.0
    %1706 = vmatpush.msra.mxu0 0.0
    %1707 = vmatpush.msra.mxu0 0.0
    %1708 = vmatpush.msra.mxu0 %v1345
    %1709 = vmatmul.f32.gmra.mxu0 %v1691
    %v1710 = vpop.f32.mrf.mxu0
    %v1711 = vadd.f32 0.0, %v1710
    %1712 = vdwg.mxu0
    %v1714 = vsel %vm507, %v1661, 0
    %1716 = vmatpush.msra.mxu0 0.0
    %1717 = vmatpush.msra.mxu0 0.0
    %1718 = vmatpush.msra.mxu0 0.0
    %1719 = vmatpush.msra.mxu0 0.0
    %1720 = vmatpush.msra.mxu0 0.0
    %1721 = vmatpush.msra.mxu0 0.0
    %1722 = vmatpush.msra.mxu0 0.0
    %1723 = vmatpush.msra.mxu0 0.0
    %1724 = vmatpush.msra.mxu0 0.0
    %1725 = vmatpush.msra.mxu0 0.0
    %1726 = vmatpush.msra.mxu0 0.0
    %1727 = vmatpush.msra.mxu0 0.0
    %1728 = vmatpush.msra.mxu0 0.0
    %1729 = vmatpush.msra.mxu0 0.0
    %1730 = vmatpush.msra.mxu0 0.0
    %1731 = vmatpush.msra.mxu0 %v1348
    %1732 = vmatmul.f32.gmra.mxu0 %v1714
    %v1733 = vpop.f32.mrf.mxu0
    %v1734 = vadd.f32 0.0, %v1733
    %1735 = vdwg.mxu0
    %v1737 = vsel %vm507, %v1662, 0
    %1739 = vmatpush.msra.mxu0 0.0
    %1740 = vmatpush.msra.mxu0 0.0
    %1741 = vmatpush.msra.mxu0 0.0
    %1742 = vmatpush.msra.mxu0 0.0
    %1743 = vmatpush.msra.mxu0 0.0
    %1744 = vmatpush.msra.mxu0 0.0
    %1745 = vmatpush.msra.mxu0 0.0
    %1746 = vmatpush.msra.mxu0 0.0
    %1747 = vmatpush.msra.mxu0 0.0
    %1748 = vmatpush.msra.mxu0 0.0
    %1749 = vmatpush.msra.mxu0 0.0
    %1750 = vmatpush.msra.mxu0 0.0
    %1751 = vmatpush.msra.mxu0 0.0
    %1752 = vmatpush.msra.mxu0 0.0
    %1753 = vmatpush.msra.mxu0 0.0
    %1754 = vmatpush.msra.mxu0 %v1351
    %1755 = vmatmul.f32.gmra.mxu0 %v1737
    %v1756 = vpop.f32.mrf.mxu0
    %v1757 = vadd.f32 0.0, %v1756
    %1758 = vdwg.mxu0
    %v1760 = vsel %vm507, %v1663, 0
    %1762 = vmatpush.msra.mxu0 0.0
    %1763 = vmatpush.msra.mxu0 0.0
    %1764 = vmatpush.msra.mxu0 0.0
    %1765 = vmatpush.msra.mxu0 0.0
    %1766 = vmatpush.msra.mxu0 0.0
    %1767 = vmatpush.msra.mxu0 0.0
    %1768 = vmatpush.msra.mxu0 0.0
    %1769 = vmatpush.msra.mxu0 0.0
    %1770 = vmatpush.msra.mxu0 0.0
    %1771 = vmatpush.msra.mxu0 0.0
    %1772 = vmatpush.msra.mxu0 0.0
    %1773 = vmatpush.msra.mxu0 0.0
    %1774 = vmatpush.msra.mxu0 0.0
    %1775 = vmatpush.msra.mxu0 0.0
    %1776 = vmatpush.msra.mxu0 0.0
    %1777 = vmatpush.msra.mxu0 %v1327
    %1778 = vmatmul.f32.gmra.mxu0 %v1760
    %v1779 = vpop.f32.mrf.mxu0
    %v1780 = vadd.f32 0.0, %v1779
    %1781 = vdwg.mxu0
    %v1783 = vsel %vm507, %v1664, 0
    %1785 = vmatpush.msra.mxu0 0.0
    %1786 = vmatpush.msra.mxu0 0.0
    %1787 = vmatpush.msra.mxu0 0.0
    %1788 = vmatpush.msra.mxu0 0.0
    %1789 = vmatpush.msra.mxu0 0.0
    %1790 = vmatpush.msra.mxu0 0.0
    %1791 = vmatpush.msra.mxu0 0.0
    %1792 = vmatpush.msra.mxu0 0.0
    %1793 = vmatpush.msra.mxu0 0.0
    %1794 = vmatpush.msra.mxu0 0.0
    %1795 = vmatpush.msra.mxu0 0.0
    %1796 = vmatpush.msra.mxu0 0.0
    %1797 = vmatpush.msra.mxu0 0.0
    %1798 = vmatpush.msra.mxu0 0.0
    %1799 = vmatpush.msra.mxu0 0.0
    %1800 = vmatpush.msra.mxu0 %v1355
    %1801 = vmatmul.f32.gmra.mxu0 %v1783
    %v1802 = vpop.f32.mrf.mxu0
    %v1803 = vadd.f32 0.0, %v1802
    %1804 = vdwg.mxu0
    %v1806 = vsel %vm507, %v1665, 0
    %1808 = vmatpush.msra.mxu0 0.0
    %1809 = vmatpush.msra.mxu0 0.0
    %1810 = vmatpush.msra.mxu0 0.0
    %1811 = vmatpush.msra.mxu0 0.0
    %1812 = vmatpush.msra.mxu0 0.0
    %1813 = vmatpush.msra.mxu0 0.0
    %1814 = vmatpush.msra.mxu0 0.0
    %1815 = vmatpush.msra.mxu0 0.0
    %1816 = vmatpush.msra.mxu0 0.0
    %1817 = vmatpush.msra.mxu0 0.0
    %1818 = vmatpush.msra.mxu0 0.0
    %1819 = vmatpush.msra.mxu0 0.0
    %1820 = vmatpush.msra.mxu0 0.0
    %1821 = vmatpush.msra.mxu0 0.0
    %1822 = vmatpush.msra.mxu0 0.0
    %1823 = vmatpush.msra.mxu0 %v1358
    %1824 = vmatmul.f32.gmra.mxu0 %v1806
    %v1825 = vpop.f32.mrf.mxu0
    %v1826 = vadd.f32 0.0, %v1825
    %1827 = vdwg.mxu0
    %v1829 = vsel %vm507, %v1666, 0
    %1831 = vmatpush.msra.mxu0 0.0
    %1832 = vmatpush.msra.mxu0 0.0
    %1833 = vmatpush.msra.mxu0 0.0
    %1834 = vmatpush.msra.mxu0 0.0
    %1835 = vmatpush.msra.mxu0 0.0
    %1836 = vmatpush.msra.mxu0 0.0
    %1837 = vmatpush.msra.mxu0 0.0
    %1838 = vmatpush.msra.mxu0 0.0
    %1839 = vmatpush.msra.mxu0 0.0
    %1840 = vmatpush.msra.mxu0 0.0
    %1841 = vmatpush.msra.mxu0 0.0
    %1842 = vmatpush.msra.mxu0 0.0
    %1843 = vmatpush.msra.mxu0 0.0
    %1844 = vmatpush.msra.mxu0 0.0
    %1845 = vmatpush.msra.mxu0 0.0
    %1846 = vmatpush.msra.mxu0 %v1361
    %1847 = vmatmul.f32.gmra.mxu0 %v1829
    %v1848 = vpop.f32.mrf.mxu0
    %v1849 = vadd.f32 0.0, %v1848
    %1850 = vdwg.mxu0
    %1852 = vrot.lane.b32.xlu0 %v1711, 16
    %v1853 = vpop.permute.xlu0 %1852
    %1856 = vrot.lane.b32.xlu0 %v1734, 32
    %v1857 = vpop.permute.xlu0 %1856
    %1860 = vrot.lane.b32.xlu0 %v1757, 48
    %v1861 = vpop.permute.xlu0 %1860
    %v1863 = vsel %vm292, %v1688, %v1853
    %v1864 = vsel %vm793, %v1863, %v1857
    %v1865 = vsel %vm795, %v1864, %v1861
    %1867 = vrot.lane.b32.xlu0 %v1803, 16
    %v1868 = vpop.permute.xlu0 %1867
    %1871 = vrot.lane.b32.xlu0 %v1826, 32
    %v1872 = vpop.permute.xlu0 %1871
    %1875 = vrot.lane.b32.xlu0 %v1849, 48
    %v1876 = vpop.permute.xlu0 %1875
    %v1878 = vsel %vm292, %v1780, %v1868
    %v1879 = vsel %vm793, %v1878, %v1872
    %v1880 = vsel %vm795, %v1879, %v1876
    %v1881 = vpack.c.bf16 %v1880, %v1865
    %s1882 = scalar_lea.vmem %s3, 32
    %v1883 = vld [vmem:[%s1882] sm:$0xf]
    %v1884 = vld [vmem:[%s1882 + $0x4] sm:$0xf]
    %v1885 = vld [vmem:[%s1882 + $0x8] sm:$0xf]
    %v1886 = vld [vmem:[%s1882 + $0xc] sm:$0xf]
    %v1887 = vld [vmem:[%s1882 + $0x10] sm:$0xf]
    %v1888 = vld [vmem:[%s1882 + $0x14] sm:$0xf]
    %v1889 = vld [vmem:[%s1882 + $0x18] sm:$0xf]
    %v1890 = vld [vmem:[%s1882 + $0x1c] sm:$0xf]
    %s1891 = scalar_lea.vmem [#allocation7], 1
    %v1892 = vld [vmem:[%s1891] sm:$0x1]
    %v1894 = vperm.slane %v1892, 0
    %v1904 = vunpack.c.l.b16 %v1883
    %v1905 = vunpack.c.l.b16 %v1884
    %v1906 = vunpack.c.l.b16 %v1885
    %v1907 = vunpack.c.l.b16 %v1886
    %v1908 = vunpack.c.l.b16 %v1887
    %v1909 = vunpack.c.l.b16 %v1888
    %v1910 = vunpack.c.l.b16 %v1889
    %v1911 = vunpack.c.l.b16 %v1890
    %v1912 = vpack.c.b16 %v1905, %v1904
    %v1913 = vpack.c.b16 %v1907, %v1906
    %v1914 = vpack.c.b16 %v1909, %v1908
    %v1915 = vpack.c.b16 %v1911, %v1910
    %v1921 = vsel %vm224, %v1881, 0
    %1923 = vmatpush.bf16.msra.mxu0 0
    %1924 = vmatpush.bf16.msra.mxu0 0
    %1925 = vmatpush.bf16.msra.mxu0 0
    %1926 = vmatpush.bf16.msra.mxu0 0
    %1927 = vmatpush.bf16.msra.mxu0 %v1915
    %1928 = vmatpush.bf16.msra.mxu0 %v1914
    %1929 = vmatpush.bf16.msra.mxu0 %v1913
    %1930 = vmatpush.bf16.msra.mxu0 %v1912
    %1931 = vmatmul.bf16.gmra.mxu0 %v1921
    %v1932 = vpop.f32.mrf.mxu0
    %v1933 = vadd.f32 %v1894, %v1932
    %v1934 = vpop.f32.mrf.mxu0
    %v1935 = vadd.f32 %v1894, %v1934
    %1936 = vdwg.mxu0
    %v1937 = vadd.f32 %v1239, %v1933
    %v1938 = vadd.f32 %v1240, %v1935
    %s1939 = scalar_lea.vmem [#allocation8], 1
    %v1940 = vld [vmem:[%s1939] sm:$0x1]
    %s1941 = scalar_lea.vmem [#allocation10], 1
    %v1942 = vld [vmem:[%s1941] sm:$0x1]
    %v1943 = vsel %vm224, %v1937, 0.0
    %1944 = vadd.xlane.f32.xlu0 %v1943
    %v1945 = vpop.xlane.xlu0 %1944
    %v1946 = vsel %vm224, %v1938, 0.0
    %1947 = vadd.xlane.f32.xlu0 %v1946
    %v1948 = vpop.xlane.xlu0 %1947
    %v1949 = vmul.f32 %v1945, %v882
    %v1950 = vmul.f32 %v1948, %v882
    %v1951 = vsub.f32 %v1937, %v1949
    %v1952 = vsub.f32 %v1938, %v1950
    %v1953 = vmul.f32 %v1951, %v1951
    %v1954 = vmul.f32 %v1952, %v1952
    %v1955 = vsel %vm224, %v1953, 0.0
    %1956 = vadd.xlane.f32.xlu0 %v1955
    %v1957 = vpop.xlane.xlu0 %1956
    %v1958 = vsel %vm224, %v1954, 0.0
    %1959 = vadd.xlane.f32.xlu0 %v1958
    %v1960 = vpop.xlane.xlu0 %1959
    %v1961 = vmul.f32 %v1957, %v882
    %v1962 = vmul.f32 %v1960, %v882
    %v1963 = vadd.f32 %v1961, 1e-05
    %v1964 = vadd.f32 %v1962, 1e-05
    %v1965 = vrsqrt.pop %v1963
    %v1966 = vmul.f32 %v1965, %v1963
    %v1967 = vmul.f32 %v1966, %v1965
    %v1968 = vmul.f32 0.5, %v1967
    %v1969 = vsub.f32 1.5, %v1968
    %v1970 = vmul.f32 %v1965, %v1969
    %vm1971 = vweird.f32 %v1963
    %vm1972 = vweird.f32 %v1965
    %vm1973 = vmor %vm1971, %vm1972
    %v1974 = vsel %vm1973, %v1965, %v1970
    %v1975 = vrsqrt.pop %v1964
    %v1976 = vmul.f32 %v1975, %v1964
    %v1977 = vmul.f32 %v1976, %v1975
    %v1978 = vmul.f32 0.5, %v1977
    %v1979 = vsub.f32 1.5, %v1978
    %v1980 = vmul.f32 %v1975, %v1979
    %vm1981 = vweird.f32 %v1964
    %vm1982 = vweird.f32 %v1975
    %vm1983 = vmor %vm1981, %vm1982
    %v1984 = vsel %vm1983, %v1975, %v1980
    %v1985 = vmul.f32 %v1951, %v1974
    %v1986 = vmul.f32 %v1952, %v1984
    %v1988 = vperm.slane %v1940, 0
    %v1990 = vmul.f32 %v1985, %v1988
    %v1991 = vmul.f32 %v1986, %v1988
    %v1993 = vperm.slane %v1942, 0
    %v1995 = vadd.f32 %v1990, %v1993
    %v1996 = vadd.f32 %v1991, %v1993
    %v1997 = vpack.c.bf16 %v1996, %v1995
    %s1998 = scalar_lea.vmem %s7, 64
    %v1999 = vld [vmem:[%s1998] sm:$0xff]
    %v2000 = vld [vmem:[%s1998 + $0x8] sm:$0xff]
    %v2001 = vld [vmem:[%s1998 + $0x10] sm:$0xff]
    %v2002 = vld [vmem:[%s1998 + $0x18] sm:$0xff]
    %v2003 = vld [vmem:[%s1998 + $0x20] sm:$0xff]
    %v2004 = vld [vmem:[%s1998 + $0x28] sm:$0xff]
    %v2005 = vld [vmem:[%s1998 + $0x30] sm:$0xff]
    %v2006 = vld [vmem:[%s1998 + $0x38] sm:$0xff]
    %s2007 = scalar_lea.vmem %s8, 2
    %v2008 = vld [vmem:[%s2007] sm:$0x3]
    %v2010 = vperm.slane %v2008, 0
    %v2011 = vperm.slane %v2008, 1
    %v2022 = vunpack.c.l.b16 %v1999
    %v2023 = vunpack.c.h.b16 %v1999
    %v2024 = vunpack.c.l.b16 %v2000
    %v2025 = vunpack.c.h.b16 %v2000
    %v2026 = vunpack.c.l.b16 %v2001
    %v2027 = vunpack.c.h.b16 %v2001
    %v2028 = vunpack.c.l.b16 %v2002
    %v2029 = vunpack.c.h.b16 %v2002
    %v2030 = vunpack.c.l.b16 %v2003
    %v2031 = vunpack.c.h.b16 %v2003
    %v2032 = vunpack.c.l.b16 %v2004
    %v2033 = vunpack.c.h.b16 %v2004
    %v2034 = vunpack.c.l.b16 %v2005
    %v2035 = vunpack.c.h.b16 %v2005
    %v2036 = vunpack.c.l.b16 %v2006
    %v2037 = vunpack.c.h.b16 %v2006
    %v2038 = vpack.c.b16 %v2024, %v2022
    %v2039 = vpack.c.b16 %v2025, %v2023
    %v2040 = vpack.c.b16 %v2028, %v2026
    %v2041 = vpack.c.b16 %v2029, %v2027
    %v2042 = vpack.c.b16 %v2032, %v2030
    %v2043 = vpack.c.b16 %v2033, %v2031
    %v2044 = vpack.c.b16 %v2036, %v2034
    %v2045 = vpack.c.b16 %v2037, %v2035
    %v2055 = vsel %vm224, %v1997, 0
    %2057 = vmatpush.bf16.msra.mxu0 0
    %2058 = vmatpush.bf16.msra.mxu0 0
    %2059 = vmatpush.bf16.msra.mxu0 0
    %2060 = vmatpush.bf16.msra.mxu0 0
    %2061 = vmatpush.bf16.msra.mxu0 %v2044
    %2062 = vmatpush.bf16.msra.mxu0 %v2042
    %2063 = vmatpush.bf16.msra.mxu0 %v2040
    %2064 = vmatpush.bf16.msra.mxu0 %v2038
    %2065 = vmatmul.bf16.gmra.mxu0 %v2055
    %v2066 = vpop.f32.mrf.mxu0
    %v2067 = vadd.f32 %v2010, %v2066
    %v2068 = vpop.f32.mrf.mxu0
    %v2069 = vadd.f32 %v2010, %v2068
    %2070 = vdwg.mxu0
    %2071 = vmatpush.bf16.msra.mxu0 0
    %2072 = vmatpush.bf16.msra.mxu0 0
    %2073 = vmatpush.bf16.msra.mxu0 0
    %2074 = vmatpush.bf16.msra.mxu0 0
    %2075 = vmatpush.bf16.msra.mxu0 %v2045
    %2076 = vmatpush.bf16.msra.mxu0 %v2043
    %2077 = vmatpush.bf16.msra.mxu0 %v2041
    %2078 = vmatpush.bf16.msra.mxu0 %v2039
    %2079 = vmatmul.bf16.gmra.mxu0 %v2055
    %v2080 = vpop.f32.mrf.mxu0
    %v2081 = vadd.f32 %v2011, %v2080
    %v2082 = vpop.f32.mrf.mxu0
    %v2083 = vadd.f32 %v2011, %v2082
    %2084 = vdwg.mxu0
    %v2085 = vmax.f32 %v2067, 0.0
    %v2086 = vmax.f32 %v2081, 0.0
    %v2087 = vmax.f32 %v2069, 0.0
    %v2088 = vmax.f32 %v2083, 0.0
    %v2089 = vpack.c.bf16 %v2087, %v2085
    %v2090 = vpack.c.bf16 %v2088, %v2086
    %s2091 = scalar_lea.vmem %s9, 128
    %v2092 = vld [vmem:[%s2091] sm:$0xf]
    %v2093 = vld [vmem:[%s2091 + $0x4] sm:$0xf]
    %v2094 = vld [vmem:[%s2091 + $0x8] sm:$0xf]
    %v2095 = vld [vmem:[%s2091 + $0xc] sm:$0xf]
    %v2096 = vld [vmem:[%s2091 + $0x10] sm:$0xf]
    %v2097 = vld [vmem:[%s2091 + $0x14] sm:$0xf]
    %v2098 = vld [vmem:[%s2091 + $0x18] sm:$0xf]
    %v2099 = vld [vmem:[%s2091 + $0x1c] sm:$0xf]
    %v2100 = vld [vmem:[%s2091 + $0x20] sm:$0xf]
    %v2101 = vld [vmem:[%s2091 + $0x24] sm:$0xf]
    %v2102 = vld [vmem:[%s2091 + $0x28] sm:$0xf]
    %v2103 = vld [vmem:[%s2091 + $0x2c] sm:$0xf]
    %v2104 = vld [vmem:[%s2091 + $0x30] sm:$0xf]
    %v2105 = vld [vmem:[%s2091 + $0x34] sm:$0xf]
    %v2106 = vld [vmem:[%s2091 + $0x38] sm:$0xf]
    %v2107 = vld [vmem:[%s2091 + $0x3c] sm:$0xf]
    %v2108 = vld [vmem:[%s2091 + $0x40] sm:$0xf]
    %v2109 = vld [vmem:[%s2091 + $0x44] sm:$0xf]
    %v2110 = vld [vmem:[%s2091 + $0x48] sm:$0xf]
    %v2111 = vld [vmem:[%s2091 + $0x4c] sm:$0xf]
    %v2112 = vld [vmem:[%s2091 + $0x50] sm:$0xf]
    %v2113 = vld [vmem:[%s2091 + $0x54] sm:$0xf]
    %v2114 = vld [vmem:[%s2091 + $0x58] sm:$0xf]
    %v2115 = vld [vmem:[%s2091 + $0x5c] sm:$0xf]
    %v2116 = vld [vmem:[%s2091 + $0x60] sm:$0xf]
    %v2117 = vld [vmem:[%s2091 + $0x64] sm:$0xf]
    %v2118 = vld [vmem:[%s2091 + $0x68] sm:$0xf]
    %v2119 = vld [vmem:[%s2091 + $0x6c] sm:$0xf]
    %v2120 = vld [vmem:[%s2091 + $0x70] sm:$0xf]
    %v2121 = vld [vmem:[%s2091 + $0x74] sm:$0xf]
    %v2122 = vld [vmem:[%s2091 + $0x78] sm:$0xf]
    %v2123 = vld [vmem:[%s2091 + $0x7c] sm:$0xf]
    %s2124 = scalar_lea.vmem %s10, 1
    %v2125 = vld [vmem:[%s2124] sm:$0x1]
    %v2127 = vperm.slane %v2125, 0
    %v2161 = vunpack.c.l.b16 %v2092
    %v2162 = vunpack.c.l.b16 %v2093
    %v2163 = vunpack.c.l.b16 %v2094
    %v2164 = vunpack.c.l.b16 %v2095
    %v2165 = vunpack.c.l.b16 %v2096
    %v2166 = vunpack.c.l.b16 %v2097
    %v2167 = vunpack.c.l.b16 %v2098
    %v2168 = vunpack.c.l.b16 %v2099
    %v2169 = vunpack.c.l.b16 %v2100
    %v2170 = vunpack.c.l.b16 %v2101
    %v2171 = vunpack.c.l.b16 %v2102
    %v2172 = vunpack.c.l.b16 %v2103
    %v2173 = vunpack.c.l.b16 %v2104
    %v2174 = vunpack.c.l.b16 %v2105
    %v2175 = vunpack.c.l.b16 %v2106
    %v2176 = vunpack.c.l.b16 %v2107
    %v2177 = vunpack.c.l.b16 %v2108
    %v2178 = vunpack.c.l.b16 %v2109
    %v2179 = vunpack.c.l.b16 %v2110
    %v2180 = vunpack.c.l.b16 %v2111
    %v2181 = vunpack.c.l.b16 %v2112
    %v2182 = vunpack.c.l.b16 %v2113
    %v2183 = vunpack.c.l.b16 %v2114
    %v2184 = vunpack.c.l.b16 %v2115
    %v2185 = vunpack.c.l.b16 %v2116
    %v2186 = vunpack.c.l.b16 %v2117
    %v2187 = vunpack.c.l.b16 %v2118
    %v2188 = vunpack.c.l.b16 %v2119
    %v2189 = vunpack.c.l.b16 %v2120
    %v2190 = vunpack.c.l.b16 %v2121
    %v2191 = vunpack.c.l.b16 %v2122
    %v2192 = vunpack.c.l.b16 %v2123
    %v2193 = vpack.c.b16 %v2162, %v2161
    %v2194 = vpack.c.b16 %v2164, %v2163
    %v2195 = vpack.c.b16 %v2166, %v2165
    %v2196 = vpack.c.b16 %v2168, %v2167
    %v2197 = vpack.c.b16 %v2170, %v2169
    %v2198 = vpack.c.b16 %v2172, %v2171
    %v2199 = vpack.c.b16 %v2174, %v2173
    %v2200 = vpack.c.b16 %v2176, %v2175
    %v2201 = vpack.c.b16 %v2178, %v2177
    %v2202 = vpack.c.b16 %v2180, %v2179
    %v2203 = vpack.c.b16 %v2182, %v2181
    %v2204 = vpack.c.b16 %v2184, %v2183
    %v2205 = vpack.c.b16 %v2186, %v2185
    %v2206 = vpack.c.b16 %v2188, %v2187
    %v2207 = vpack.c.b16 %v2190, %v2189
    %v2208 = vpack.c.b16 %v2192, %v2191
    %2225 = vmatpush.bf16.msra.mxu0 %v2200
    %2226 = vmatpush.bf16.msra.mxu0 %v2199
    %2227 = vmatpush.bf16.msra.mxu0 %v2198
    %2228 = vmatpush.bf16.msra.mxu0 %v2197
    %2229 = vmatpush.bf16.msra.mxu0 %v2196
    %2230 = vmatpush.bf16.msra.mxu0 %v2195
    %2231 = vmatpush.bf16.msra.mxu0 %v2194
    %2232 = vmatpush.bf16.msra.mxu0 %v2193
    %2233 = vmatmul.bf16.gmra.mxu0 %v2089
    %v2234 = vpop.f32.mrf.mxu0
    %v2235 = vadd.f32 %v2127, %v2234
    %v2236 = vpop.f32.mrf.mxu0
    %v2237 = vadd.f32 %v2127, %v2236
    %2238 = vdwg.mxu0
    %2239 = vmatpush.bf16.msra.mxu0 %v2208
    %2240 = vmatpush.bf16.msra.mxu0 %v2207
    %2241 = vmatpush.bf16.msra.mxu0 %v2206
    %2242 = vmatpush.bf16.msra.mxu0 %v2205
    %2243 = vmatpush.bf16.msra.mxu0 %v2204
    %2244 = vmatpush.bf16.msra.mxu0 %v2203
    %2245 = vmatpush.bf16.msra.mxu0 %v2202
    %2246 = vmatpush.bf16.msra.mxu0 %v2201
    %2247 = vmatmul.bf16.gmra.mxu0 %v2090
    %v2248 = vpop.f32.mrf.mxu0
    %v2249 = vadd.f32 %v2235, %v2248
    %v2250 = vpop.f32.mrf.mxu0
    %v2251 = vadd.f32 %v2237, %v2250
    %2252 = vdwg.mxu0
    %v2253 = vadd.f32 %v1995, %v2249
    %v2254 = vadd.f32 %v1996, %v2251
    %s2255 = scalar_lea.vmem %s11, 1
    %v2256 = vld [vmem:[%s2255] sm:$0x1]
    %s2257 = scalar_lea.vmem [#allocation11], 1
    %v2258 = vld [vmem:[%s2257] sm:$0x1]
    %v2259 = vsel %vm224, %v2253, 0.0
    %2260 = vadd.xlane.f32.xlu0 %v2259
    %v2261 = vpop.xlane.xlu0 %2260
    %v2262 = vsel %vm224, %v2254, 0.0
    %2263 = vadd.xlane.f32.xlu0 %v2262
    %v2264 = vpop.xlane.xlu0 %2263
    %v2265 = vmul.f32 %v2261, %v882
    %v2266 = vmul.f32 %v2264, %v882
    %v2267 = vsub.f32 %v2253, %v2265
    %v2268 = vsub.f32 %v2254, %v2266
    %v2269 = vmul.f32 %v2267, %v2267
    %v2270 = vmul.f32 %v2268, %v2268
    %v2271 = vsel %vm224, %v2269, 0.0
    %2272 = vadd.xlane.f32.xlu0 %v2271
    %v2273 = vpop.xlane.xlu0 %2272
    %v2274 = vsel %vm224, %v2270, 0.0
    %2275 = vadd.xlane.f32.xlu0 %v2274
    %v2276 = vpop.xlane.xlu0 %2275
    %v2277 = vmul.f32 %v2273, %v882
    %v2278 = vmul.f32 %v2276, %v882
    %v2279 = vadd.f32 %v2277, 1e-05
    %v2280 = vadd.f32 %v2278, 1e-05
    %v2281 = vrsqrt.pop %v2279
    %v2282 = vmul.f32 %v2281, %v2279
    %v2283 = vmul.f32 %v2282, %v2281
    %v2284 = vmul.f32 0.5, %v2283
    %v2285 = vsub.f32 1.5, %v2284
    %v2286 = vmul.f32 %v2281, %v2285
    %vm2287 = vweird.f32 %v2279
    %vm2288 = vweird.f32 %v2281
    %vm2289 = vmor %vm2287, %vm2288
    %v2290 = vsel %vm2289, %v2281, %v2286
    %v2291 = vrsqrt.pop %v2280
    %v2292 = vmul.f32 %v2291, %v2280
    %v2293 = vmul.f32 %v2292, %v2291
    %v2294 = vmul.f32 0.5, %v2293
    %v2295 = vsub.f32 1.5, %v2294
    %v2296 = vmul.f32 %v2291, %v2295
    %vm2297 = vweird.f32 %v2280
    %vm2298 = vweird.f32 %v2291
    %vm2299 = vmor %vm2297, %vm2298
    %v2300 = vsel %vm2299, %v2291, %v2296
    %v2301 = vmul.f32 %v2267, %v2290
    %v2302 = vmul.f32 %v2268, %v2300
    %v2304 = vperm.slane %v2256, 0
    %v2306 = vmul.f32 %v2301, %v2304
    %v2307 = vmul.f32 %v2302, %v2304
    %v2309 = vperm.slane %v2258, 0
    %v2311 = vadd.f32 %v2306, %v2309
    %v2312 = vadd.f32 %v2307, %v2309
    %v2313 = vpack.c.bf16 %v2312, %v2311
    %v2314 = vld [vmem:[#allocation13] sm:$0xf]
    %v2315 = vld [vmem:[#allocation13 + $0x4] sm:$0xf]
    %v2316 = vld [vmem:[#allocation13 + $0x8] sm:$0xf]
    %v2317 = vld [vmem:[#allocation13 + $0xc] sm:$0xf]
    %v2318 = vld [vmem:[#allocation13 + $0x10] sm:$0xf]
    %v2319 = vld [vmem:[#allocation13 + $0x14] sm:$0xf]
    %v2320 = vld [vmem:[#allocation13 + $0x18] sm:$0xf]
    %v2321 = vld [vmem:[#allocation13 + $0x1c] sm:$0xf]
    %v2322 = vld [vmem:[%s14] sm:$0x1]
    %v2324 = vperm.slane %v2322, 0
    %v2334 = vunpack.c.l.b16 %v2314
    %v2335 = vunpack.c.l.b16 %v2315
    %v2336 = vunpack.c.l.b16 %v2316
    %v2337 = vunpack.c.l.b16 %v2317
    %v2338 = vunpack.c.l.b16 %v2318
    %v2339 = vunpack.c.l.b16 %v2319
    %v2340 = vunpack.c.l.b16 %v2320
    %v2341 = vunpack.c.l.b16 %v2321
    %v2342 = vpack.c.b16 %v2335, %v2334
    %v2343 = vpack.c.b16 %v2337, %v2336
    %v2344 = vpack.c.b16 %v2339, %v2338
    %v2345 = vpack.c.b16 %v2341, %v2340
    %v2351 = vsel %vm224, %v2313, 0
    %2353 = vmatpush.bf16.msra.mxu0 0
    %2354 = vmatpush.bf16.msra.mxu0 0
    %2355 = vmatpush.bf16.msra.mxu0 0
    %2356 = vmatpush.bf16.msra.mxu0 0
    %2357 = vmatpush.bf16.msra.mxu0 %v2345
    %2358 = vmatpush.bf16.msra.mxu0 %v2344
    %2359 = vmatpush.bf16.msra.mxu0 %v2343
    %2360 = vmatpush.bf16.msra.mxu0 %v2342
    %2361 = vmatmul.bf16.gmra.mxu0 %v2351
    %v2362 = vpop.f32.mrf.mxu0
    %v2363 = vadd.f32 %v2324, %v2362
    %v2364 = vpop.f32.mrf.mxu0
    %v2365 = vadd.f32 %v2324, %v2364
    %2366 = vdwg.mxu0
    %v2367 = vmax.f32 %v2363, 0.0
    %v2368 = vmax.f32 %v2365, 0.0
    %v2369 = vpack.c.bf16 %v2368, %v2367
    %v2370 = vld [vmem:[%s15] sm:$0xff]
    %v2371 = vld [vmem:[%s15 + $0x8] sm:$0xff]
    %v2372 = vld [vmem:[%s15 + $0x10] sm:$0xff]
    %v2373 = vld [vmem:[%s15 + $0x18] sm:$0xff]
    %v2374 = vld [vmem:[%s15 + $0x20] sm:$0xff]
    %v2375 = vld [vmem:[%s15 + $0x28] sm:$0xff]
    %v2376 = vld [vmem:[%s15 + $0x30] sm:$0xff]
    %v2377 = vld [vmem:[%s15 + $0x38] sm:$0xff]
    %v2378 = vld [vmem:[%s16] sm:$0x3]
    %v2380 = vperm.slane %v2378, 0
    %v2381 = vperm.slane %v2378, 1
    %v2392 = vunpack.c.l.b16 %v2370
    %v2393 = vunpack.c.h.b16 %v2370
    %v2394 = vunpack.c.l.b16 %v2371
    %v2395 = vunpack.c.h.b16 %v2371
    %v2396 = vunpack.c.l.b16 %v2372
    %v2397 = vunpack.c.h.b16 %v2372
    %v2398 = vunpack.c.l.b16 %v2373
    %v2399 = vunpack.c.h.b16 %v2373
    %v2400 = vunpack.c.l.b16 %v2374
    %v2401 = vunpack.c.h.b16 %v2374
    %v2402 = vunpack.c.l.b16 %v2375
    %v2403 = vunpack.c.h.b16 %v2375
    %v2404 = vunpack.c.l.b16 %v2376
    %v2405 = vunpack.c.h.b16 %v2376
    %v2406 = vunpack.c.l.b16 %v2377
    %v2407 = vunpack.c.h.b16 %v2377
    %v2408 = vpack.c.b16 %v2394, %v2392
    %v2409 = vpack.c.b16 %v2395, %v2393
    %v2410 = vpack.c.b16 %v2398, %v2396
    %v2411 = vpack.c.b16 %v2399, %v2397
    %v2412 = vpack.c.b16 %v2402, %v2400
    %v2413 = vpack.c.b16 %v2403, %v2401
    %v2414 = vpack.c.b16 %v2406, %v2404
    %v2415 = vpack.c.b16 %v2407, %v2405
    %v2425 = vsel %vm224, %v2369, 0
    %2427 = vmatpush.bf16.msra.mxu0 0
    %2428 = vmatpush.bf16.msra.mxu0 0
    %2429 = vmatpush.bf16.msra.mxu0 0
    %2430 = vmatpush.bf16.msra.mxu0 0
    %2431 = vmatpush.bf16.msra.mxu0 %v2414
    %2432 = vmatpush.bf16.msra.mxu0 %v2412
    %2433 = vmatpush.bf16.msra.mxu0 %v2410
    %2434 = vmatpush.bf16.msra.mxu0 %v2408
    %2435 = vmatmul.bf16.gmra.mxu0 %v2425
    %v2436 = vpop.f32.mrf.mxu0
    %v2437 = vadd.f32 %v2380, %v2436
    %v2438 = vpop.f32.mrf.mxu0
    %v2439 = vadd.f32 %v2380, %v2438
    %2440 = vdwg.mxu0
    %2441 = vmatpush.bf16.msra.mxu0 0
    %2442 = vmatpush.bf16.msra.mxu0 0
    %2443 = vmatpush.bf16.msra.mxu0 0
    %2444 = vmatpush.bf16.msra.mxu0 0
    %2445 = vmatpush.bf16.msra.mxu0 %v2415
    %2446 = vmatpush.bf16.msra.mxu0 %v2413
    %2447 = vmatpush.bf16.msra.mxu0 %v2411
    %2448 = vmatpush.bf16.msra.mxu0 %v2409
    %2449 = vmatmul.bf16.gmra.mxu0 %v2425
    %v2450 = vpop.f32.mrf.mxu0
    %v2451 = vadd.f32 %v2381, %v2450
    %v2452 = vpop.f32.mrf.mxu0
    %v2453 = vadd.f32 %v2381, %v2452
    %2454 = vdwg.mxu0
    %2455 = vst [vmem:[#allocation14] sm:$0xff] %v2437
    %vm2456 = vcmask 334848
    %2457 = vst.msk [vmem:[#allocation14 + $0x8] sm:$0xff] %vm2456, %v2451
    %2458 = vst [vmem:[#allocation14 + $0x10] sm:$0xff] %v2439
    %2459 = vst.msk [vmem:[#allocation14 + $0x18] sm:$0xff] %vm2456, %v2453
    // Predicated region
    $region98: #{tpu_custom_call.1} parent=1 // pred_check
      _
    $region99: #{tpu_custom_call.1} parent=1 // pred_check_branch
      %2461 = sbr.rel (0) target = $region101
    $region100: #{tpu_custom_call.1} parent=1 // pred_region
      %2463 = vsyncadd [#allocation4], 0
      %s2464 = sshll.u32 [#allocation14], 4
      %s2465 = int_to_ptr.vmem [resolvable:$true] %s2464
      %s2466 = sshll.u32 %s17, 4
      %s2467 = int_to_ptr.hbm [resolvable:$true] %s2466
      %2472 = dma.vmem_to_hbm [thread:$0]  %s2465, 512, %s2467, [#allocation4], 256, 256, 16
    $region101: #{tpu_custom_call.1} parent=1 // pred_fallthru
      _
    // Predicated region
    $region102: #{tpu_custom_call.1} parent=1 // pred_check
      _
    $region103: #{tpu_custom_call.1} parent=1 // pred_check_branch
      %2474 = sbr.rel (0) target = $region105
    $region104: #{tpu_custom_call.1} parent=1 // pred_region
      %2476 = dma.done [#allocation4], 512
    $region105: #{tpu_custom_call.1} parent=1 // pred_fallthru
      _
    %2477 = vsyncpa [#allocation3], 1
    %2478 = vsyncpa [#allocation6], 1
    %2479 = vsyncpa [#allocation9], 1
    %2480 = vsyncpa [#allocation12], 1
    %2481 = vsyncpa [#allocation4], 1

</llo_original>
